<compile_context>
chip_gen: v5e
topology: v5e:2x2
jax: 0.10.0
libtpu: 0.0.40
codegen_flags: <defaults>
</compile_context>

<pallas_src>
import jax
import jax.numpy as jnp
from jax.experimental import pallas as pl
from jax.experimental.pallas import tpu as pltpu

DIM = 128
PALLAS_MIN_ROWS = 256  # below this, the fixed pallas launch cost dominates


def _round_up(x, m):
    return -(-x // m) * m


def _attn_kernel(q_ref, kt_ref, vt_ref, o_ref):
    # q_ref : (TM, D)  f32 row tile of queries
    # kt_ref: (D, D)   bf16 = (scale * k_matrix).T  (VMEM-resident constant)
    # vt_ref: (D, D)   bf16 = v_matrix.T            (VMEM-resident constant)
    # o_ref : (TM, D)  f32 output row tile
    q = q_ref[...].astype(jnp.bfloat16)

    # s = q @ (scale*k).T   (MXU, bf16 in / f32 acc; standard contraction)
    s = jnp.dot(q, kt_ref[...], preferred_element_type=jnp.float32)

    # numerically-stable softmax along the lane dim
    s = s - jnp.max(s, axis=-1, keepdims=True)
    e = jnp.exp(s)
    inv = pl.reciprocal(jnp.sum(e, axis=-1, keepdims=True), approx=True)
    p = (e * inv).astype(jnp.bfloat16)

    # out = p @ v.T   (MXU, bf16 in / f32 acc)
    o_ref[...] = jnp.dot(p, vt_ref[...],
                         preferred_element_type=jnp.float32).astype(o_ref.dtype)


def init_params(dim=DIM, seed=0):
    key = jax.random.PRNGKey(seed)
    kq, kk, kv = jax.random.split(key, 3)
    scale_factor = jnp.asarray([dim ** (-0.5)], dtype=jnp.float32)
    q_matrix = jax.random.normal(kq, (dim, dim), dtype=jnp.float32)  # unused in forward
    k_matrix = jax.random.normal(kk, (dim, dim), dtype=jnp.float32)
    v_matrix = jax.random.normal(kv, (dim, dim), dtype=jnp.float32)
    return scale_factor, q_matrix, k_matrix, v_matrix


def model_forward(params, queries, keys=None, values=None, block_rows=1024):
    """Mirrors Model.forward(queries, keys, values); keys/values are unused."""
    scale_factor, _q_matrix, k_matrix, v_matrix = params
    N, D = queries.shape

    # Constant prep (traced jnp ops, jit-safe — no concretization of the
    # trainable scale parameter): fold scale into k, pre-transpose, cast bf16.
    scale = scale_factor.reshape(-1)[0]
    kt = (k_matrix * scale).T.astype(jnp.bfloat16)   # (D, D)
    vt = v_matrix.T.astype(jnp.bfloat16)             # (D, D)

    if N < PALLAS_MIN_ROWS:
        # Tiny-N fallback: fused XLA path, avoids pallas launch + padding.
        s = jnp.dot(queries.astype(jnp.bfloat16), kt,
                    preferred_element_type=jnp.float32)
        p = jax.nn.softmax(s, axis=-1)
        out = jnp.dot(p.astype(jnp.bfloat16), vt,
                      preferred_element_type=jnp.float32)
        return out.reshape(1, 1, N, D)

    # Row tile: big (HBM / per-step-overhead bound), >= 512, multiple of 8,
    # and sized so the grid has >= 2 steps when N is large enough (v7x has
    # two TensorCores sharing the "parallel" grid axis).
    block_rows = max(512, _round_up(block_rows, 8))
    tm = min(block_rows, max(512, _round_up(pl.cdiv(N, 2), 8)))
    n_pad = _round_up(N, tm)

    q = queries if n_pad == N else jnp.pad(queries, ((0, n_pad - N), (0, 0)))

    grid = (n_pad // tm,)
    cost = pl.CostEstimate(
        flops=4 * n_pad * D * D,                        # two (tm,D)x(D,D) matmuls
        transcendentals=n_pad * D,                      # exp
        bytes_accessed=2 * n_pad * D * 4 + 2 * D * D * 2,  # f32 q/out + bf16 k/v
    )

    out = pl.pallas_call(
        _attn_kernel,
        out_shape=jax.ShapeDtypeStruct((n_pad, D), jnp.float32),
        grid=grid,
        in_specs=[
            pl.BlockSpec((tm, D), lambda i: (i, 0)),   # queries row tile
            pl.BlockSpec((D, D), lambda i: (0, 0)),    # (scale*k).T, VMEM-resident
            pl.BlockSpec((D, D), lambda i: (0, 0)),    # v.T, VMEM-resident
        ],
        out_specs=pl.BlockSpec((tm, D), lambda i: (i, 0)),
        compiler_params=pltpu.CompilerParams(
            dimension_semantics=("parallel",)),
        cost_estimate=cost,
    )(q, kt, vt)

    if n_pad != N:
        out = out[:N]

    # torch: matmul -> (1,1,N,D), unsqueeze(2) -> softmax/dropout -> matmul
    #        -> squeeze(2) -> (1,1,N,D)
    return out.reshape(1, 1, N, D)


def _reference(params, queries):
    scale_factor, _q, k_matrix, v_matrix = params
    qk = queries @ k_matrix.T
    p = jax.nn.softmax(qk * scale_factor[0], axis=-1)
    out = p @ v_matrix.T
    return out.reshape(1, 1, queries.shape[0], queries.shape[1])


if __name__ == "__main__":
    params = init_params(DIM, seed=0)

    key = jax.random.PRNGKey(0)
    kq, kk, kv = jax.random.split(key, 3)

    # Spec-shaped input (N = 1, as in the torch script) -> tiny-N fused path.
    queries = jax.random.normal(kq, (1, DIM), dtype=jnp.float32)
    keys = jax.random.normal(kk, (1, DIM), dtype=jnp.float32)      # unused by forward
    values = jax.random.normal(kv, (1, DIM), dtype=jnp.float32)    # unused by forward

    out = jax.block_until_ready(model_forward(params, queries, keys, values))
    ref = _reference(params, queries)
    assert out.shape == (1, 1, 1, DIM), out.shape
    # bf16 matmuls + approx reciprocal -> slightly relaxed tolerance vs f32 ref
    assert jnp.allclose(out, ref, atol=2e-2, rtol=2e-2), \
        "mismatch vs JAX reference (N=1)"

    # A larger-N case exercising the Pallas path: tm=1024, 2-step parallel grid.
    q_big = jax.random.normal(jax.random.PRNGKey(1), (2048, DIM), dtype=jnp.float32)
    out_big = jax.block_until_ready(model_forward(params, q_big))
    ref_big = _reference(params, q_big)
    assert out_big.shape == (1, 1, 2048, DIM), out_big.shape
    assert jnp.allclose(out_big, ref_big, atol=2e-2, rtol=2e-2), \
        "mismatch vs JAX reference (N=2048)"

    # A non-multiple-of-tile N to exercise padding + slice.
    q_odd = jax.random.normal(jax.random.PRNGKey(2), (1300, DIM), dtype=jnp.float32)
    out_odd = jax.block_until_ready(model_forward(params, q_odd))
    ref_odd = _reference(params, q_odd)
    assert out_odd.shape == (1, 1, 1300, DIM), out_odd.shape
    assert jnp.allclose(out_odd, ref_odd, atol=2e-2, rtol=2e-2), \
        "mismatch vs JAX reference (N=1300)"

    print("KERNEL_OK")
</pallas_src>

<mosaic_0001>
module attributes {stable_mosaic.version = 11 : i64} {
  func.func @_attn_kernel(%arg0: i32, %arg1: memref<1024x128xf32, #tpu.memory_space<vmem>>, %arg2: memref<128x128xbf16, #tpu.memory_space<vmem>>, %arg3: memref<128x128xbf16, #tpu.memory_space<vmem>>, %arg4: memref<1024x128xf32, #tpu.memory_space<vmem>>) attributes {dimension_semantics = [#tpu.dimension_semantics<parallel>], iteration_bounds = array<i64: 2>, scalar_prefetch = 0 : i64, scratch_operands = 0 : i64, tpu.core_type = #tpu.core_type<tc>, window_params = [{transform_indices = @transform_0, window_bounds = array<i64: 1024, 128>}, {pipeline_mode = #tpu.pipeline_mode<synchronous>, transform_indices = @transform_1, window_bounds = array<i64: 128, 128>}, {pipeline_mode = #tpu.pipeline_mode<synchronous>, transform_indices = @transform_2, window_bounds = array<i64: 128, 128>}, {transform_indices = @transform_3, window_bounds = array<i64: 1024, 128>}]} {
    %c0 = arith.constant 0 : index
    %c0_0 = arith.constant 0 : index
    %0 = vector.load %arg1[%c0, %c0_0] : memref<1024x128xf32, #tpu.memory_space<vmem>>, vector<1024x128xf32>
    %1 = arith.truncf %0 : vector<1024x128xf32> to vector<1024x128xbf16>
    %c0_1 = arith.constant 0 : index
    %c0_2 = arith.constant 0 : index
    %2 = vector.load %arg2[%c0_1, %c0_2] : memref<128x128xbf16, #tpu.memory_space<vmem>>, vector<128x128xbf16>
    %cst = arith.constant dense<0.000000e+00> : vector<1024x128xf32>
    %3 = tpu.matmul %1, %2, %cst {dimension_numbers = #tpu.dot_dimension_numbers<[1], [0], [0], [1], [0, 0, 1, 1], [], []>} : vector<1024x128xbf16>, vector<128x128xbf16>, vector<1024x128xf32> -> vector<1024x128xf32>
    %cst_3 = arith.constant dense<0xFF800000> : vector<1024xf32>
    %4 = vector.multi_reduction <maximumf>, %3, %cst_3 [1] : vector<1024x128xf32> to vector<1024xf32>
    %5 = vector.shape_cast %4 : vector<1024xf32> to vector<1024x1xf32>
    %6 = vector.broadcast %5 : vector<1024x1xf32> to vector<1024x128xf32>
    %7 = arith.subf %3, %6 : vector<1024x128xf32>
    %8 = math.exp %7 : vector<1024x128xf32>
    %cst_4 = arith.constant dense<0.000000e+00> : vector<1024xf32>
    %9 = vector.multi_reduction <add>, %8, %cst_4 [1] : vector<1024x128xf32> to vector<1024xf32>
    %10 = vector.shape_cast %9 : vector<1024xf32> to vector<1024x1xf32>
    %11 = tpu.reciprocal %10 {approx = true} : vector<1024x1xf32> -> vector<1024x1xf32>
    %12 = vector.broadcast %11 : vector<1024x1xf32> to vector<1024x128xf32>
    %13 = arith.mulf %8, %12 : vector<1024x128xf32>
    %14 = arith.truncf %13 : vector<1024x128xf32> to vector<1024x128xbf16>
    %c0_5 = arith.constant 0 : index
    %c0_6 = arith.constant 0 : index
    %15 = vector.load %arg3[%c0_5, %c0_6] : memref<128x128xbf16, #tpu.memory_space<vmem>>, vector<128x128xbf16>
    %cst_7 = arith.constant dense<0.000000e+00> : vector<1024x128xf32>
    %16 = tpu.matmul %14, %15, %cst_7 {dimension_numbers = #tpu.dot_dimension_numbers<[1], [0], [0], [1], [0, 0, 1, 1], [], []>} : vector<1024x128xbf16>, vector<128x128xbf16>, vector<1024x128xf32> -> vector<1024x128xf32>
    %c0_8 = arith.constant 0 : index
    %c0_9 = arith.constant 0 : index
    %17 = vector.load %arg4[%c0_8, %c0_9] : memref<1024x128xf32, #tpu.memory_space<vmem>>, vector<1024x128xf32>
    tpu.vector_store %arg4[%c0_8, %c0_9], %16 {strides = array<i32>} : memref<1024x128xf32, #tpu.memory_space<vmem>>, vector<1024x128xf32>,
    return
  }
  func.func @transform_0(%arg0: i32) -> (i32, i32) {
    %c0_i32 = arith.constant 0 : i32
    %c0_i32_0 = arith.constant 0 : i32
    return %arg0, %c0_i32 : i32, i32
  }
  func.func @transform_1(%arg0: i32) -> (i32, i32) {
    %c0_i32 = arith.constant 0 : i32
    %c0_i32_0 = arith.constant 0 : i32
    %c0_i32_1 = arith.constant 0 : i32
    return %c0_i32, %c0_i32_0 : i32, i32
  }
  func.func @transform_2(%arg0: i32) -> (i32, i32) {
    %c0_i32 = arith.constant 0 : i32
    %c0_i32_0 = arith.constant 0 : i32
    %c0_i32_1 = arith.constant 0 : i32
    return %c0_i32, %c0_i32_0 : i32, i32
  }
  func.func @transform_3(%arg0: i32) -> (i32, i32) {
    %c0_i32 = arith.constant 0 : i32
    %c0_i32_0 = arith.constant 0 : i32
    return %arg0, %c0_i32 : i32, i32
  }
}

</mosaic_0001>

<llo_original>
// kernel: tpu_custom_call.1
$region0: #{tpu_custom_call.1}
  #allocation0 [shape = 'u32[]', space=smem, size = 0x4, offset = 0x4, fixed_abs, tag = 'smem constant byte address 0x4 - core index']
  #allocation1 [shape = 'u32[72,128]{1,0:T(1,128)}', space=vmem, size = 0x9000, scoped, tag = 'internal scratch']
  %s0 = inlined_call_operand.hbm [shape: f32[2048,128], index: 0, kind: input, shape index: {}]
  %s1 = inlined_call_operand.hbm [shape: bf16[128,128], index: 1, kind: input, shape index: {}]
  %s2 = inlined_call_operand.hbm [shape: bf16[128,128], index: 2, kind: input, shape index: {}]
  %s3 = inlined_call_operand.hbm [shape: f32[2048,128], index: 3, kind: output, shape index: {}]
  %s4 = sld [smem:[#allocation0]]
  $region57: #{tpu_custom_call.1} parent=0
    _
  %s6 = ssub.s32 1, %s4
  %s7 = scalar_select 0, %s6, %s4
  $region1: #{tpu_custom_call.1} parent=0
    #allocation2 [shape = 'u8[1048576]{0}', space=vmem, size = 0x100000, scoped, tag = 'input window, operand 0']
    #allocation3 [shape = 's32[2]{0}', space=sflag, size = 0x8, scoped, tag = 'scoped memory for tpu_custom_call.1']
    #allocation4 [shape = 's32[2]{0}', space=sflag, size = 0x8, scoped, tag = 'scoped memory for tpu_custom_call.1']
    #allocation5 [shape = 'u8[32768]{0}', space=vmem, size = 0x8000, scoped, tag = 'input window, operand 1, single buffered']
    #allocation6 [shape = 's32[1]{0}', space=sflag, size = 0x4, scoped, tag = 'scoped memory for tpu_custom_call.1']
    #allocation7 [shape = 'u8[32768]{0}', space=vmem, size = 0x8000, scoped, tag = 'input window, operand 2, single buffered']
    #allocation8 [shape = 'u8[1048576]{0}', space=vmem, size = 0x100000, scoped, tag = 'output window, operand 0']
    %8 = vsyncpa [#allocation3], 0
    %s9 = scalar_lea.sflag [#allocation3], 1
    %10 = vsyncpa %s9, 0
    %11 = vsyncpa [#allocation6], 0
    %12 = vsyncpa [#allocation4], 0
    %s13 = scalar_lea.sflag [#allocation4], 1
    %14 = vsyncpa %s13, 0
    loop: start=0, step=1, limit=4
    $region2: #{tpu_custom_call.1} parent=1 // loop_pre_header
      _
    $region3: #{tpu_custom_call.1} parent=1 // loop_header
      %s16 = sphi 0, %s20
      %p17 = scmp.ge.s32.totalorder %s16, 4
      %s26 = sphi 0, %s28
      %s29 = sphi 0, %s26
      %s30 = sphi 0, %s29
      %s46 = sphi 0, %s30
      %s50 = sphi 0, %s50
      %s52 = sphi 0, %s50
      %s53 = sphi 0, %s52
      %s67 = sphi 0, %s53
      %s71 = sphi 0, %s71
      %s73 = sphi 0, %s71
      %s74 = sphi 0, %s73
      %s88 = sphi 0, %s74
      %s94 = sphi 0, %s96
      %s97 = sphi 0, %s94
      %s98 = sphi 0, %s97
      %s114 = sphi 0, %s98
    $region4: #{tpu_custom_call.1} parent=1 // loop_header_branch
      %19 = sbr.rel (%p17) target = $region8
    $region5: #{tpu_custom_call.1} parent=1 // loop_body
      %s21 = ssub.s32 %s16, 1
      %s22 = ssub.s32 %s16, 2
      %s23 = sadd.s32 %s16, 1
      %s24 = ssub.s32 %s16, %s23
      %p25 = scmp.eq.s32.totalorder %s24, 0
      %s27 = sadd.s32 %s26, 1
      %s28 = scalar_select %p25, %s26, %s27
      %p31 = pneg %p25
      %p32 = scmp.eq.s32.totalorder %s16, 1
      %p33 = por %p31, %p32
      %p34 = scmp.ne.s32.totalorder %s26, %s29
      %p35 = scmp.eq.s32.totalorder %s16, 0
      %p36 = por %p34, %p35
      %p37 = scmp.ne.s32.totalorder %s26, %s29
      %p38 = scmp.eq.s32.totalorder %s21, 1
      %p39 = por %p37, %p38
      %p40 = scmp.ne.s32.totalorder %s29, %s30
      %p41 = scmp.eq.s32.totalorder %s21, 0
      %p42 = por %p40, %p41
      %p43 = scmp.ne.s32.totalorder %s29, %s30
      %p44 = scmp.eq.s32.totalorder %s22, 1
      %p45 = por %p43, %p44
      %p47 = scmp.ne.s32.totalorder %s30, %s46
      %p48 = scmp.eq.s32.totalorder %s22, 0
      %p49 = por %p47, %p48
      %s51 = sadd.s32 %s50, 1
      %p54 = scmp.eq.s32.totalorder %s16, 1
      %p55 = scmp.ne.s32.totalorder %s50, %s52
      %p56 = scmp.eq.s32.totalorder %s16, 0
      %p57 = por %p55, %p56
      %p58 = scmp.ne.s32.totalorder %s50, %s52
      %p59 = scmp.eq.s32.totalorder %s21, 1
      %p60 = por %p58, %p59
      %p61 = scmp.ne.s32.totalorder %s52, %s53
      %p62 = scmp.eq.s32.totalorder %s21, 0
      %p63 = por %p61, %p62
      %p64 = scmp.ne.s32.totalorder %s52, %s53
      %p65 = scmp.eq.s32.totalorder %s22, 1
      %p66 = por %p64, %p65
      %p68 = scmp.ne.s32.totalorder %s53, %s67
      %p69 = scmp.eq.s32.totalorder %s22, 0
      %p70 = por %p68, %p69
      %s72 = sadd.s32 %s71, 1
      %p75 = scmp.eq.s32.totalorder %s16, 1
      %p76 = scmp.ne.s32.totalorder %s71, %s73
      %p77 = scmp.eq.s32.totalorder %s16, 0
      %p78 = por %p76, %p77
      %p79 = scmp.ne.s32.totalorder %s71, %s73
      %p80 = scmp.eq.s32.totalorder %s21, 1
      %p81 = por %p79, %p80
      %p82 = scmp.ne.s32.totalorder %s73, %s74
      %p83 = scmp.eq.s32.totalorder %s21, 0
      %p84 = por %p82, %p83
      %p85 = scmp.ne.s32.totalorder %s73, %s74
      %p86 = scmp.eq.s32.totalorder %s22, 1
      %p87 = por %p85, %p86
      %p89 = scmp.ne.s32.totalorder %s74, %s88
      %p90 = scmp.eq.s32.totalorder %s22, 0
      %p91 = por %p89, %p90
      %s92 = ssub.s32 %s16, %s23
      %p93 = scmp.eq.s32.totalorder %s92, 0
      %s95 = sadd.s32 %s94, 1
      %s96 = scalar_select %p93, %s94, %s95
      %p99 = pneg %p93
      %p100 = scmp.eq.s32.totalorder %s16, 1
      %p101 = por %p99, %p100
      %p102 = scmp.ne.s32.totalorder %s94, %s97
      %p103 = scmp.eq.s32.totalorder %s16, 0
      %p104 = por %p102, %p103
      %p105 = scmp.ne.s32.totalorder %s94, %s97
      %p106 = scmp.eq.s32.totalorder %s21, 1
      %p107 = por %p105, %p106
      %p108 = scmp.ne.s32.totalorder %s97, %s98
      %p109 = scmp.eq.s32.totalorder %s21, 0
      %p110 = por %p108, %p109
      %p111 = scmp.ne.s32.totalorder %s97, %s98
      %p112 = scmp.eq.s32.totalorder %s22, 1
      %p113 = por %p111, %p112
      %p115 = scmp.ne.s32.totalorder %s98, %s114
      %p116 = scmp.eq.s32.totalorder %s22, 0
      %p117 = por %p115, %p116
      %p118 = scmp.le.s32.totalorder 1, %s16
      %p119 = scmp.lt.s32.totalorder %s16, 3
      %p120 = pnand %p118, %p119
      %p121 = pneg %p120
      // Predicated region
      $region9: #{tpu_custom_call.1} parent=5 // pred_check
        _
      $region10: #{tpu_custom_call.1} parent=5 // pred_check_branch
        %123 = sbr.rel (%p120) target = $region12
      $region11: #{tpu_custom_call.1} parent=5 // pred_region
        %s124 = ssub.s32 %s16, 1
        // Predicated region
        $region13: #{tpu_custom_call.1} parent=11 // pred_check
          %p125 = pneg %p63
        $region14: #{tpu_custom_call.1} parent=11 // pred_check_branch
          %127 = sbr.rel (%p125) target = $region16
        $region15: #{tpu_custom_call.1} parent=11 // pred_region
          %129 = vsyncadd [#allocation6], 0
          %s130 = sshll.u32 %s1, 4
          %s131 = int_to_ptr.hbm [resolvable:$true] %s130
          %s132 = sshll.u32 [#allocation5], 4
          %s133 = int_to_ptr.vmem [resolvable:$true] %s132
          %138 = dma.hbm_to_vmem [thread:$0]  %s131, 1024, %s133, [#allocation6], 64, 64, 4
        $region16: #{tpu_custom_call.1} parent=11 // pred_fallthru
          _
        // Predicated region
        $region17: #{tpu_custom_call.1} parent=11 // pred_check
          %p139 = pneg %p84
        $region18: #{tpu_custom_call.1} parent=11 // pred_check_branch
          %141 = sbr.rel (%p139) target = $region20
        $region19: #{tpu_custom_call.1} parent=11 // pred_region
          %143 = vsyncadd [#allocation6], 0
          %s144 = sshll.u32 %s2, 4
          %s145 = int_to_ptr.hbm [resolvable:$true] %s144
          %s146 = sshll.u32 [#allocation7], 4
          %s147 = int_to_ptr.vmem [resolvable:$true] %s146
          %152 = dma.hbm_to_vmem [thread:$0]  %s145, 1024, %s147, [#allocation6], 64, 64, 4
        $region20: #{tpu_custom_call.1} parent=11 // pred_fallthru
          _
      $region12: #{tpu_custom_call.1} parent=5 // pred_fallthru
        _
      %p153 = scmp.lt.s32.totalorder %s16, 2
      // Predicated region
      $region21: #{tpu_custom_call.1} parent=5 // pred_check
        %p154 = pneg %p153
      $region22: #{tpu_custom_call.1} parent=5 // pred_check_branch
        %156 = sbr.rel (%p154) target = $region24
      $region23: #{tpu_custom_call.1} parent=5 // pred_region
        // Predicated region
        $region25: #{tpu_custom_call.1} parent=23 // pred_check
          %p157 = pneg %p36
        $region26: #{tpu_custom_call.1} parent=23 // pred_check_branch
          %159 = sbr.rel (%p157) target = $region28
        $region27: #{tpu_custom_call.1} parent=23 // pred_region
          %s160 = sand.u32 %s26, 1
          %s161 = scalar_lea.sflag [#allocation3], %s160
          %s162 = sand.u32 %s26, 1
          %s163 = smul.addr %s162, 1024
          %s164 = scalar_lea.vmem [#allocation2], %s163
          %s165 = smul.u32 128, %s16
          %167 = vsyncadd %s161, 0
          %s168 = smul.addr %s165, 8
          %s169 = scalar_lea.hbm %s0, %s168
          %s170 = sshll.u32 %s169, 4
          %s171 = int_to_ptr.hbm [resolvable:$true] %s170
          %s172 = sshll.u32 %s164, 4
          %s173 = int_to_ptr.vmem [resolvable:$true] %s172
          %178 = dma.hbm_to_vmem [thread:$0]  %s171, 16384, %s173, %s161, 128, 128, 8
        $region28: #{tpu_custom_call.1} parent=23 // pred_fallthru
          _
      $region24: #{tpu_custom_call.1} parent=5 // pred_fallthru
        _
      %p179 = scmp.le.s32.totalorder 1, %s16
      %p180 = scmp.lt.s32.totalorder %s16, 3
      %p181 = pnand %p179, %p180
      %p182 = pneg %p181
      // Predicated region
      $region29: #{tpu_custom_call.1} parent=5 // pred_check
        _
      $region30: #{tpu_custom_call.1} parent=5 // pred_check_branch
        %184 = sbr.rel (%p181) target = $region32
      $region31: #{tpu_custom_call.1} parent=5 // pred_region
        %s185 = ssub.s32 %s16, 1
        %s186 = sand.u32 %s29, 1
        %s187 = scalar_lea.sflag [#allocation3], %s186
        %s188 = sand.u32 %s29, 1
        %s189 = smul.addr %s188, 1024
        %s190 = scalar_lea.vmem [#allocation2], %s189
        // Predicated region
        $region33: #{tpu_custom_call.1} parent=31 // pred_check
          %p191 = pneg %p42
        $region34: #{tpu_custom_call.1} parent=31 // pred_check_branch
          %193 = sbr.rel (%p191) target = $region36
        $region35: #{tpu_custom_call.1} parent=31 // pred_region
          %195 = dma.done %s187, 16384
        $region36: #{tpu_custom_call.1} parent=31 // pred_fallthru
          _
        // Predicated region
        $region37: #{tpu_custom_call.1} parent=31 // pred_check
          %p196 = pneg %p63
        $region38: #{tpu_custom_call.1} parent=31 // pred_check_branch
          %198 = sbr.rel (%p196) target = $region40
        $region39: #{tpu_custom_call.1} parent=31 // pred_region
          %200 = dma.done [#allocation6], 1024
        $region40: #{tpu_custom_call.1} parent=31 // pred_fallthru
          _
        // Predicated region
        $region41: #{tpu_custom_call.1} parent=31 // pred_check
          %p201 = pneg %p84
        $region42: #{tpu_custom_call.1} parent=31 // pred_check_branch
          %203 = sbr.rel (%p201) target = $region44
        $region43: #{tpu_custom_call.1} parent=31 // pred_region
          %205 = dma.done [#allocation6], 1024
        $region44: #{tpu_custom_call.1} parent=31 // pred_fallthru
          _
        %s206 = sand.u32 %s29, 1
        %s207 = scalar_lea.sflag [#allocation3], %s206
        %s208 = sand.u32 %s29, 1
        %s209 = smul.addr %s208, 1024
        %s210 = scalar_lea.vmem [#allocation2], %s209
        %p211 = pneg %p42
        %p212 = pneg %p39
        %p213 = pneg %p63
        %p214 = pneg %p60
        %p215 = pneg %p84
        %p216 = pneg %p81
        %p217 = pneg %p110
        %p218 = pneg %p107
        %s219 = sand.u32 %s97, 1
        %s220 = scalar_lea.sflag [#allocation4], %s219
        %s221 = sand.u32 %s97, 1
        %s222 = smul.addr %s221, 1024
        %s223 = scalar_lea.vmem [#allocation8], %s222
        %s224 = smul.u32 128, %s21
        %s225 = smul.u32 128, %s21
        %v226 = vld [vmem:[%s190] sm:$0xff]
        %v227 = vld [vmem:[%s190 + $0x8] sm:$0xff]
        %v228 = vld [vmem:[%s190 + $0x10] sm:$0xff]
        %v229 = vld [vmem:[%s190 + $0x18] sm:$0xff]
        %v230 = vld [vmem:[%s190 + $0x20] sm:$0xff]
        %v231 = vld [vmem:[%s190 + $0x28] sm:$0xff]
        %v232 = vld [vmem:[%s190 + $0x30] sm:$0xff]
        %v233 = vld [vmem:[%s190 + $0x38] sm:$0xff]
        %v234 = vld [vmem:[%s190 + $0x40] sm:$0xff]
        %v235 = vld [vmem:[%s190 + $0x48] sm:$0xff]
        %v236 = vld [vmem:[%s190 + $0x50] sm:$0xff]
        %v237 = vld [vmem:[%s190 + $0x58] sm:$0xff]
        %v238 = vld [vmem:[%s190 + $0x60] sm:$0xff]
        %v239 = vld [vmem:[%s190 + $0x68] sm:$0xff]
        %v240 = vld [vmem:[%s190 + $0x70] sm:$0xff]
        %v241 = vld [vmem:[%s190 + $0x78] sm:$0xff]
        %v242 = vld [vmem:[%s190 + $0x80] sm:$0xff]
        %v243 = vld [vmem:[%s190 + $0x88] sm:$0xff]
        %v244 = vld [vmem:[%s190 + $0x90] sm:$0xff]
        %v245 = vld [vmem:[%s190 + $0x98] sm:$0xff]
        %v246 = vld [vmem:[%s190 + $0xa0] sm:$0xff]
        %v247 = vld [vmem:[%s190 + $0xa8] sm:$0xff]
        %v248 = vld [vmem:[%s190 + $0xb0] sm:$0xff]
        %v249 = vld [vmem:[%s190 + $0xb8] sm:$0xff]
        %v250 = vld [vmem:[%s190 + $0xc0] sm:$0xff]
        %v251 = vld [vmem:[%s190 + $0xc8] sm:$0xff]
        %v252 = vld [vmem:[%s190 + $0xd0] sm:$0xff]
        %v253 = vld [vmem:[%s190 + $0xd8] sm:$0xff]
        %v254 = vld [vmem:[%s190 + $0xe0] sm:$0xff]
        %v255 = vld [vmem:[%s190 + $0xe8] sm:$0xff]
        %v256 = vld [vmem:[%s190 + $0xf0] sm:$0xff]
        %v257 = vld [vmem:[%s190 + $0xf8] sm:$0xff]
        %v258 = vld [vmem:[%s190 + $0x100] sm:$0xff]
        %v259 = vld [vmem:[%s190 + $0x108] sm:$0xff]
        %v260 = vld [vmem:[%s190 + $0x110] sm:$0xff]
        %v261 = vld [vmem:[%s190 + $0x118] sm:$0xff]
        %v262 = vld [vmem:[%s190 + $0x120] sm:$0xff]
        %v263 = vld [vmem:[%s190 + $0x128] sm:$0xff]
        %v264 = vld [vmem:[%s190 + $0x130] sm:$0xff]
        %v265 = vld [vmem:[%s190 + $0x138] sm:$0xff]
        %v266 = vld [vmem:[%s190 + $0x140] sm:$0xff]
        %v267 = vld [vmem:[%s190 + $0x148] sm:$0xff]
        %v268 = vld [vmem:[%s190 + $0x150] sm:$0xff]
        %v269 = vld [vmem:[%s190 + $0x158] sm:$0xff]
        %v270 = vld [vmem:[%s190 + $0x160] sm:$0xff]
        %v271 = vld [vmem:[%s190 + $0x168] sm:$0xff]
        %v272 = vld [vmem:[%s190 + $0x170] sm:$0xff]
        %v273 = vld [vmem:[%s190 + $0x178] sm:$0xff]
        %v274 = vld [vmem:[%s190 + $0x180] sm:$0xff]
        %v275 = vld [vmem:[%s190 + $0x188] sm:$0xff]
        %v276 = vld [vmem:[%s190 + $0x190] sm:$0xff]
        %v277 = vld [vmem:[%s190 + $0x198] sm:$0xff]
        %v278 = vld [vmem:[%s190 + $0x1a0] sm:$0xff]
        %v279 = vld [vmem:[%s190 + $0x1a8] sm:$0xff]
        %v280 = vld [vmem:[%s190 + $0x1b0] sm:$0xff]
        %v281 = vld [vmem:[%s190 + $0x1b8] sm:$0xff]
        %v282 = vld [vmem:[%s190 + $0x1c0] sm:$0xff]
        %v283 = vld [vmem:[%s190 + $0x1c8] sm:$0xff]
        %v284 = vld [vmem:[%s190 + $0x1d0] sm:$0xff]
        %v285 = vld [vmem:[%s190 + $0x1d8] sm:$0xff]
        %v286 = vld [vmem:[%s190 + $0x1e0] sm:$0xff]
        %v287 = vld [vmem:[%s190 + $0x1e8] sm:$0xff]
        %v288 = vld [vmem:[%s190 + $0x1f0] sm:$0xff]
        %v289 = vld [vmem:[%s190 + $0x1f8] sm:$0xff]
        %v290 = vld [vmem:[%s190 + $0x200] sm:$0xff]
        %v291 = vld [vmem:[%s190 + $0x208] sm:$0xff]
        %v292 = vld [vmem:[%s190 + $0x210] sm:$0xff]
        %v293 = vld [vmem:[%s190 + $0x218] sm:$0xff]
        %v294 = vld [vmem:[%s190 + $0x220] sm:$0xff]
        %v295 = vld [vmem:[%s190 + $0x228] sm:$0xff]
        %v296 = vld [vmem:[%s190 + $0x230] sm:$0xff]
        %v297 = vld [vmem:[%s190 + $0x238] sm:$0xff]
        %v298 = vld [vmem:[%s190 + $0x240] sm:$0xff]
        %v299 = vld [vmem:[%s190 + $0x248] sm:$0xff]
        %v300 = vld [vmem:[%s190 + $0x250] sm:$0xff]
        %v301 = vld [vmem:[%s190 + $0x258] sm:$0xff]
        %v302 = vld [vmem:[%s190 + $0x260] sm:$0xff]
        %v303 = vld [vmem:[%s190 + $0x268] sm:$0xff]
        %v304 = vld [vmem:[%s190 + $0x270] sm:$0xff]
        %v305 = vld [vmem:[%s190 + $0x278] sm:$0xff]
        %v306 = vld [vmem:[%s190 + $0x280] sm:$0xff]
        %v307 = vld [vmem:[%s190 + $0x288] sm:$0xff]
        %v308 = vld [vmem:[%s190 + $0x290] sm:$0xff]
        %v309 = vld [vmem:[%s190 + $0x298] sm:$0xff]
        %v310 = vld [vmem:[%s190 + $0x2a0] sm:$0xff]
        %v311 = vld [vmem:[%s190 + $0x2a8] sm:$0xff]
        %v312 = vld [vmem:[%s190 + $0x2b0] sm:$0xff]
        %v313 = vld [vmem:[%s190 + $0x2b8] sm:$0xff]
        %v314 = vld [vmem:[%s190 + $0x2c0] sm:$0xff]
        %v315 = vld [vmem:[%s190 + $0x2c8] sm:$0xff]
        %v316 = vld [vmem:[%s190 + $0x2d0] sm:$0xff]
        %v317 = vld [vmem:[%s190 + $0x2d8] sm:$0xff]
        %v318 = vld [vmem:[%s190 + $0x2e0] sm:$0xff]
        %v319 = vld [vmem:[%s190 + $0x2e8] sm:$0xff]
        %v320 = vld [vmem:[%s190 + $0x2f0] sm:$0xff]
        %v321 = vld [vmem:[%s190 + $0x2f8] sm:$0xff]
        %v322 = vld [vmem:[%s190 + $0x300] sm:$0xff]
        %v323 = vld [vmem:[%s190 + $0x308] sm:$0xff]
        %v324 = vld [vmem:[%s190 + $0x310] sm:$0xff]
        %v325 = vld [vmem:[%s190 + $0x318] sm:$0xff]
        %v326 = vld [vmem:[%s190 + $0x320] sm:$0xff]
        %v327 = vld [vmem:[%s190 + $0x328] sm:$0xff]
        %v328 = vld [vmem:[%s190 + $0x330] sm:$0xff]
        %v329 = vld [vmem:[%s190 + $0x338] sm:$0xff]
        %v330 = vld [vmem:[%s190 + $0x340] sm:$0xff]
        %v331 = vld [vmem:[%s190 + $0x348] sm:$0xff]
        %v332 = vld [vmem:[%s190 + $0x350] sm:$0xff]
        %v333 = vld [vmem:[%s190 + $0x358] sm:$0xff]
        %v334 = vld [vmem:[%s190 + $0x360] sm:$0xff]
        %v335 = vld [vmem:[%s190 + $0x368] sm:$0xff]
        %v336 = vld [vmem:[%s190 + $0x370] sm:$0xff]
        %v337 = vld [vmem:[%s190 + $0x378] sm:$0xff]
        %v338 = vld [vmem:[%s190 + $0x380] sm:$0xff]
        %v339 = vld [vmem:[%s190 + $0x388] sm:$0xff]
        %v340 = vld [vmem:[%s190 + $0x390] sm:$0xff]
        %v341 = vld [vmem:[%s190 + $0x398] sm:$0xff]
        %v342 = vld [vmem:[%s190 + $0x3a0] sm:$0xff]
        %v343 = vld [vmem:[%s190 + $0x3a8] sm:$0xff]
        %v344 = vld [vmem:[%s190 + $0x3b0] sm:$0xff]
        %v345 = vld [vmem:[%s190 + $0x3b8] sm:$0xff]
        %v346 = vld [vmem:[%s190 + $0x3c0] sm:$0xff]
        %v347 = vld [vmem:[%s190 + $0x3c8] sm:$0xff]
        %v348 = vld [vmem:[%s190 + $0x3d0] sm:$0xff]
        %v349 = vld [vmem:[%s190 + $0x3d8] sm:$0xff]
        %v350 = vld [vmem:[%s190 + $0x3e0] sm:$0xff]
        %v351 = vld [vmem:[%s190 + $0x3e8] sm:$0xff]
        %v352 = vld [vmem:[%s190 + $0x3f0] sm:$0xff]
        %v353 = vld [vmem:[%s190 + $0x3f8] sm:$0xff]
        %v354 = vpack.c.bf16 %v227, %v226
        %v355 = vpack.c.bf16 %v229, %v228
        %v356 = vpack.c.bf16 %v231, %v230
        %v357 = vpack.c.bf16 %v233, %v232
        %v358 = vpack.c.bf16 %v235, %v234
        %v359 = vpack.c.bf16 %v237, %v236
        %v360 = vpack.c.bf16 %v239, %v238
        %v361 = vpack.c.bf16 %v241, %v240
        %v362 = vpack.c.bf16 %v243, %v242
        %v363 = vpack.c.bf16 %v245, %v244
        %v364 = vpack.c.bf16 %v247, %v246
        %v365 = vpack.c.bf16 %v249, %v248
        %v366 = vpack.c.bf16 %v251, %v250
        %v367 = vpack.c.bf16 %v253, %v252
        %v368 = vpack.c.bf16 %v255, %v254
        %v369 = vpack.c.bf16 %v257, %v256
        %v370 = vpack.c.bf16 %v259, %v258
        %v371 = vpack.c.bf16 %v261, %v260
        %v372 = vpack.c.bf16 %v263, %v262
        %v373 = vpack.c.bf16 %v265, %v264
        %v374 = vpack.c.bf16 %v267, %v266
        %v375 = vpack.c.bf16 %v269, %v268
        %v376 = vpack.c.bf16 %v271, %v270
        %v377 = vpack.c.bf16 %v273, %v272
        %v378 = vpack.c.bf16 %v275, %v274
        %v379 = vpack.c.bf16 %v277, %v276
        %v380 = vpack.c.bf16 %v279, %v278
        %v381 = vpack.c.bf16 %v281, %v280
        %v382 = vpack.c.bf16 %v283, %v282
        %v383 = vpack.c.bf16 %v285, %v284
        %v384 = vpack.c.bf16 %v287, %v286
        %v385 = vpack.c.bf16 %v289, %v288
        %v386 = vpack.c.bf16 %v291, %v290
        %v387 = vpack.c.bf16 %v293, %v292
        %v388 = vpack.c.bf16 %v295, %v294
        %v389 = vpack.c.bf16 %v297, %v296
        %v390 = vpack.c.bf16 %v299, %v298
        %v391 = vpack.c.bf16 %v301, %v300
        %v392 = vpack.c.bf16 %v303, %v302
        %v393 = vpack.c.bf16 %v305, %v304
        %v394 = vpack.c.bf16 %v307, %v306
        %v395 = vpack.c.bf16 %v309, %v308
        %v396 = vpack.c.bf16 %v311, %v310
        %v397 = vpack.c.bf16 %v313, %v312
        %v398 = vpack.c.bf16 %v315, %v314
        %v399 = vpack.c.bf16 %v317, %v316
        %v400 = vpack.c.bf16 %v319, %v318
        %v401 = vpack.c.bf16 %v321, %v320
        %v402 = vpack.c.bf16 %v323, %v322
        %v403 = vpack.c.bf16 %v325, %v324
        %v404 = vpack.c.bf16 %v327, %v326
        %v405 = vpack.c.bf16 %v329, %v328
        %v406 = vpack.c.bf16 %v331, %v330
        %v407 = vpack.c.bf16 %v333, %v332
        %v408 = vpack.c.bf16 %v335, %v334
        %v409 = vpack.c.bf16 %v337, %v336
        %v410 = vpack.c.bf16 %v339, %v338
        %v411 = vpack.c.bf16 %v341, %v340
        %v412 = vpack.c.bf16 %v343, %v342
        %v413 = vpack.c.bf16 %v345, %v344
        %v414 = vpack.c.bf16 %v347, %v346
        %v415 = vpack.c.bf16 %v349, %v348
        %v416 = vpack.c.bf16 %v351, %v350
        %v417 = vpack.c.bf16 %v353, %v352
        %v418 = vld [vmem:[#allocation5] sm:$0xf]
        %v419 = vld [vmem:[#allocation5 + $0x4] sm:$0xf]
        %v420 = vld [vmem:[#allocation5 + $0x8] sm:$0xf]
        %v421 = vld [vmem:[#allocation5 + $0xc] sm:$0xf]
        %v422 = vld [vmem:[#allocation5 + $0x10] sm:$0xf]
        %v423 = vld [vmem:[#allocation5 + $0x14] sm:$0xf]
        %v424 = vld [vmem:[#allocation5 + $0x18] sm:$0xf]
        %v425 = vld [vmem:[#allocation5 + $0x1c] sm:$0xf]
        %v426 = vld [vmem:[#allocation5 + $0x20] sm:$0xf]
        %v427 = vld [vmem:[#allocation5 + $0x24] sm:$0xf]
        %v428 = vld [vmem:[#allocation5 + $0x28] sm:$0xf]
        %v429 = vld [vmem:[#allocation5 + $0x2c] sm:$0xf]
        %v430 = vld [vmem:[#allocation5 + $0x30] sm:$0xf]
        %v431 = vld [vmem:[#allocation5 + $0x34] sm:$0xf]
        %v432 = vld [vmem:[#allocation5 + $0x38] sm:$0xf]
        %v433 = vld [vmem:[#allocation5 + $0x3c] sm:$0xf]
        %v450 = vunpack.c.l.b16 %v418
        %v451 = vunpack.c.l.b16 %v419
        %v452 = vunpack.c.l.b16 %v420
        %v453 = vunpack.c.l.b16 %v421
        %v454 = vunpack.c.l.b16 %v422
        %v455 = vunpack.c.l.b16 %v423
        %v456 = vunpack.c.l.b16 %v424
        %v457 = vunpack.c.l.b16 %v425
        %v458 = vunpack.c.l.b16 %v426
        %v459 = vunpack.c.l.b16 %v427
        %v460 = vunpack.c.l.b16 %v428
        %v461 = vunpack.c.l.b16 %v429
        %v462 = vunpack.c.l.b16 %v430
        %v463 = vunpack.c.l.b16 %v431
        %v464 = vunpack.c.l.b16 %v432
        %v465 = vunpack.c.l.b16 %v433
        %v466 = vpack.c.b16 %v451, %v450
        %v467 = vpack.c.b16 %v453, %v452
        %v468 = vpack.c.b16 %v455, %v454
        %v469 = vpack.c.b16 %v457, %v456
        %v470 = vpack.c.b16 %v459, %v458
        %v471 = vpack.c.b16 %v461, %v460
        %v472 = vpack.c.b16 %v463, %v462
        %v473 = vpack.c.b16 %v465, %v464
        %482 = vmatpush.bf16.msra.mxu0 %v473
        %483 = vmatpush.bf16.msra.mxu0 %v472
        %484 = vmatpush.bf16.msra.mxu0 %v471
        %485 = vmatpush.bf16.msra.mxu0 %v470
        %486 = vmatpush.bf16.msra.mxu0 %v469
        %487 = vmatpush.bf16.msra.mxu0 %v468
        %488 = vmatpush.bf16.msra.mxu0 %v467
        %489 = vmatpush.bf16.msra.mxu0 %v466
        %490 = vmatmul.bf16.gmra.mxu0 %v354
        %v491 = vpop.f32.mrf.mxu0
        %v492 = vadd.f32 0.0, %v491
        %v493 = vpop.f32.mrf.mxu0
        %v494 = vadd.f32 0.0, %v493
        %495 = vmatmul.bf16.gmra.mxu0 %v355
        %v496 = vpop.f32.mrf.mxu0
        %v497 = vadd.f32 0.0, %v496
        %v498 = vpop.f32.mrf.mxu0
        %v499 = vadd.f32 0.0, %v498
        %500 = vmatmul.bf16.gmra.mxu0 %v356
        %v501 = vpop.f32.mrf.mxu0
        %v502 = vadd.f32 0.0, %v501
        %v503 = vpop.f32.mrf.mxu0
        %v504 = vadd.f32 0.0, %v503
        %505 = vmatmul.bf16.gmra.mxu0 %v357
        %v506 = vpop.f32.mrf.mxu0
        %v507 = vadd.f32 0.0, %v506
        %v508 = vpop.f32.mrf.mxu0
        %v509 = vadd.f32 0.0, %v508
        %510 = vmatmul.bf16.gmra.mxu0 %v358
        %v511 = vpop.f32.mrf.mxu0
        %v512 = vadd.f32 0.0, %v511
        %v513 = vpop.f32.mrf.mxu0
        %v514 = vadd.f32 0.0, %v513
        %515 = vmatmul.bf16.gmra.mxu0 %v359
        %v516 = vpop.f32.mrf.mxu0
        %v517 = vadd.f32 0.0, %v516
        %v518 = vpop.f32.mrf.mxu0
        %v519 = vadd.f32 0.0, %v518
        %520 = vmatmul.bf16.gmra.mxu0 %v360
        %v521 = vpop.f32.mrf.mxu0
        %v522 = vadd.f32 0.0, %v521
        %v523 = vpop.f32.mrf.mxu0
        %v524 = vadd.f32 0.0, %v523
        %525 = vmatmul.bf16.gmra.mxu0 %v361
        %v526 = vpop.f32.mrf.mxu0
        %v527 = vadd.f32 0.0, %v526
        %v528 = vpop.f32.mrf.mxu0
        %v529 = vadd.f32 0.0, %v528
        %530 = vmatmul.bf16.gmra.mxu0 %v362
        %v531 = vpop.f32.mrf.mxu0
        %v532 = vadd.f32 0.0, %v531
        %v533 = vpop.f32.mrf.mxu0
        %v534 = vadd.f32 0.0, %v533
        %535 = vmatmul.bf16.gmra.mxu0 %v363
        %v536 = vpop.f32.mrf.mxu0
        %v537 = vadd.f32 0.0, %v536
        %v538 = vpop.f32.mrf.mxu0
        %v539 = vadd.f32 0.0, %v538
        %540 = vmatmul.bf16.gmra.mxu0 %v364
        %v541 = vpop.f32.mrf.mxu0
        %v542 = vadd.f32 0.0, %v541
        %v543 = vpop.f32.mrf.mxu0
        %v544 = vadd.f32 0.0, %v543
        %545 = vmatmul.bf16.gmra.mxu0 %v365
        %v546 = vpop.f32.mrf.mxu0
        %v547 = vadd.f32 0.0, %v546
        %v548 = vpop.f32.mrf.mxu0
        %v549 = vadd.f32 0.0, %v548
        %550 = vmatmul.bf16.gmra.mxu0 %v366
        %v551 = vpop.f32.mrf.mxu0
        %v552 = vadd.f32 0.0, %v551
        %v553 = vpop.f32.mrf.mxu0
        %v554 = vadd.f32 0.0, %v553
        %555 = vmatmul.bf16.gmra.mxu0 %v367
        %v556 = vpop.f32.mrf.mxu0
        %v557 = vadd.f32 0.0, %v556
        %v558 = vpop.f32.mrf.mxu0
        %v559 = vadd.f32 0.0, %v558
        %560 = vmatmul.bf16.gmra.mxu0 %v368
        %v561 = vpop.f32.mrf.mxu0
        %v562 = vadd.f32 0.0, %v561
        %v563 = vpop.f32.mrf.mxu0
        %v564 = vadd.f32 0.0, %v563
        %565 = vmatmul.bf16.gmra.mxu0 %v369
        %v566 = vpop.f32.mrf.mxu0
        %v567 = vadd.f32 0.0, %v566
        %v568 = vpop.f32.mrf.mxu0
        %v569 = vadd.f32 0.0, %v568
        %570 = vmatmul.bf16.gmra.mxu0 %v370
        %v571 = vpop.f32.mrf.mxu0
        %v572 = vadd.f32 0.0, %v571
        %v573 = vpop.f32.mrf.mxu0
        %v574 = vadd.f32 0.0, %v573
        %575 = vmatmul.bf16.gmra.mxu0 %v371
        %v576 = vpop.f32.mrf.mxu0
        %v577 = vadd.f32 0.0, %v576
        %v578 = vpop.f32.mrf.mxu0
        %v579 = vadd.f32 0.0, %v578
        %580 = vmatmul.bf16.gmra.mxu0 %v372
        %v581 = vpop.f32.mrf.mxu0
        %v582 = vadd.f32 0.0, %v581
        %v583 = vpop.f32.mrf.mxu0
        %v584 = vadd.f32 0.0, %v583
        %585 = vmatmul.bf16.gmra.mxu0 %v373
        %v586 = vpop.f32.mrf.mxu0
        %v587 = vadd.f32 0.0, %v586
        %v588 = vpop.f32.mrf.mxu0
        %v589 = vadd.f32 0.0, %v588
        %590 = vmatmul.bf16.gmra.mxu0 %v374
        %v591 = vpop.f32.mrf.mxu0
        %v592 = vadd.f32 0.0, %v591
        %v593 = vpop.f32.mrf.mxu0
        %v594 = vadd.f32 0.0, %v593
        %595 = vmatmul.bf16.gmra.mxu0 %v375
        %v596 = vpop.f32.mrf.mxu0
        %v597 = vadd.f32 0.0, %v596
        %v598 = vpop.f32.mrf.mxu0
        %v599 = vadd.f32 0.0, %v598
        %600 = vmatmul.bf16.gmra.mxu0 %v376
        %v601 = vpop.f32.mrf.mxu0
        %v602 = vadd.f32 0.0, %v601
        %v603 = vpop.f32.mrf.mxu0
        %v604 = vadd.f32 0.0, %v603
        %605 = vmatmul.bf16.gmra.mxu0 %v377
        %v606 = vpop.f32.mrf.mxu0
        %v607 = vadd.f32 0.0, %v606
        %v608 = vpop.f32.mrf.mxu0
        %v609 = vadd.f32 0.0, %v608
        %610 = vmatmul.bf16.gmra.mxu0 %v378
        %v611 = vpop.f32.mrf.mxu0
        %v612 = vadd.f32 0.0, %v611
        %v613 = vpop.f32.mrf.mxu0
        %v614 = vadd.f32 0.0, %v613
        %615 = vmatmul.bf16.gmra.mxu0 %v379
        %v616 = vpop.f32.mrf.mxu0
        %v617 = vadd.f32 0.0, %v616
        %v618 = vpop.f32.mrf.mxu0
        %v619 = vadd.f32 0.0, %v618
        %620 = vmatmul.bf16.gmra.mxu0 %v380
        %v621 = vpop.f32.mrf.mxu0
        %v622 = vadd.f32 0.0, %v621
        %v623 = vpop.f32.mrf.mxu0
        %v624 = vadd.f32 0.0, %v623
        %625 = vmatmul.bf16.gmra.mxu0 %v381
        %v626 = vpop.f32.mrf.mxu0
        %v627 = vadd.f32 0.0, %v626
        %v628 = vpop.f32.mrf.mxu0
        %v629 = vadd.f32 0.0, %v628
        %630 = vmatmul.bf16.gmra.mxu0 %v382
        %v631 = vpop.f32.mrf.mxu0
        %v632 = vadd.f32 0.0, %v631
        %v633 = vpop.f32.mrf.mxu0
        %v634 = vadd.f32 0.0, %v633
        %635 = vmatmul.bf16.gmra.mxu0 %v383
        %v636 = vpop.f32.mrf.mxu0
        %v637 = vadd.f32 0.0, %v636
        %v638 = vpop.f32.mrf.mxu0
        %v639 = vadd.f32 0.0, %v638
        %640 = vmatmul.bf16.gmra.mxu0 %v384
        %v641 = vpop.f32.mrf.mxu0
        %v642 = vadd.f32 0.0, %v641
        %v643 = vpop.f32.mrf.mxu0
        %v644 = vadd.f32 0.0, %v643
        %645 = vmatmul.bf16.gmra.mxu0 %v385
        %v646 = vpop.f32.mrf.mxu0
        %v647 = vadd.f32 0.0, %v646
        %v648 = vpop.f32.mrf.mxu0
        %v649 = vadd.f32 0.0, %v648
        %650 = vmatmul.bf16.gmra.mxu0 %v386
        %v651 = vpop.f32.mrf.mxu0
        %v652 = vadd.f32 0.0, %v651
        %v653 = vpop.f32.mrf.mxu0
        %v654 = vadd.f32 0.0, %v653
        %655 = vmatmul.bf16.gmra.mxu0 %v387
        %v656 = vpop.f32.mrf.mxu0
        %v657 = vadd.f32 0.0, %v656
        %v658 = vpop.f32.mrf.mxu0
        %v659 = vadd.f32 0.0, %v658
        %660 = vmatmul.bf16.gmra.mxu0 %v388
        %v661 = vpop.f32.mrf.mxu0
        %v662 = vadd.f32 0.0, %v661
        %v663 = vpop.f32.mrf.mxu0
        %v664 = vadd.f32 0.0, %v663
        %665 = vmatmul.bf16.gmra.mxu0 %v389
        %v666 = vpop.f32.mrf.mxu0
        %v667 = vadd.f32 0.0, %v666
        %v668 = vpop.f32.mrf.mxu0
        %v669 = vadd.f32 0.0, %v668
        %670 = vmatmul.bf16.gmra.mxu0 %v390
        %v671 = vpop.f32.mrf.mxu0
        %v672 = vadd.f32 0.0, %v671
        %v673 = vpop.f32.mrf.mxu0
        %v674 = vadd.f32 0.0, %v673
        %675 = vmatmul.bf16.gmra.mxu0 %v391
        %v676 = vpop.f32.mrf.mxu0
        %v677 = vadd.f32 0.0, %v676
        %v678 = vpop.f32.mrf.mxu0
        %v679 = vadd.f32 0.0, %v678
        %680 = vmatmul.bf16.gmra.mxu0 %v392
        %v681 = vpop.f32.mrf.mxu0
        %v682 = vadd.f32 0.0, %v681
        %v683 = vpop.f32.mrf.mxu0
        %v684 = vadd.f32 0.0, %v683
        %685 = vmatmul.bf16.gmra.mxu0 %v393
        %v686 = vpop.f32.mrf.mxu0
        %v687 = vadd.f32 0.0, %v686
        %v688 = vpop.f32.mrf.mxu0
        %v689 = vadd.f32 0.0, %v688
        %690 = vmatmul.bf16.gmra.mxu0 %v394
        %v691 = vpop.f32.mrf.mxu0
        %v692 = vadd.f32 0.0, %v691
        %v693 = vpop.f32.mrf.mxu0
        %v694 = vadd.f32 0.0, %v693
        %695 = vmatmul.bf16.gmra.mxu0 %v395
        %v696 = vpop.f32.mrf.mxu0
        %v697 = vadd.f32 0.0, %v696
        %v698 = vpop.f32.mrf.mxu0
        %v699 = vadd.f32 0.0, %v698
        %700 = vmatmul.bf16.gmra.mxu0 %v396
        %v701 = vpop.f32.mrf.mxu0
        %v702 = vadd.f32 0.0, %v701
        %v703 = vpop.f32.mrf.mxu0
        %v704 = vadd.f32 0.0, %v703
        %705 = vmatmul.bf16.gmra.mxu0 %v397
        %v706 = vpop.f32.mrf.mxu0
        %v707 = vadd.f32 0.0, %v706
        %v708 = vpop.f32.mrf.mxu0
        %v709 = vadd.f32 0.0, %v708
        %710 = vmatmul.bf16.gmra.mxu0 %v398
        %v711 = vpop.f32.mrf.mxu0
        %v712 = vadd.f32 0.0, %v711
        %v713 = vpop.f32.mrf.mxu0
        %v714 = vadd.f32 0.0, %v713
        %715 = vmatmul.bf16.gmra.mxu0 %v399
        %v716 = vpop.f32.mrf.mxu0
        %v717 = vadd.f32 0.0, %v716
        %v718 = vpop.f32.mrf.mxu0
        %v719 = vadd.f32 0.0, %v718
        %720 = vmatmul.bf16.gmra.mxu0 %v400
        %v721 = vpop.f32.mrf.mxu0
        %v722 = vadd.f32 0.0, %v721
        %v723 = vpop.f32.mrf.mxu0
        %v724 = vadd.f32 0.0, %v723
        %725 = vmatmul.bf16.gmra.mxu0 %v401
        %v726 = vpop.f32.mrf.mxu0
        %v727 = vadd.f32 0.0, %v726
        %v728 = vpop.f32.mrf.mxu0
        %v729 = vadd.f32 0.0, %v728
        %730 = vmatmul.bf16.gmra.mxu0 %v402
        %v731 = vpop.f32.mrf.mxu0
        %v732 = vadd.f32 0.0, %v731
        %v733 = vpop.f32.mrf.mxu0
        %v734 = vadd.f32 0.0, %v733
        %735 = vmatmul.bf16.gmra.mxu0 %v403
        %v736 = vpop.f32.mrf.mxu0
        %v737 = vadd.f32 0.0, %v736
        %v738 = vpop.f32.mrf.mxu0
        %v739 = vadd.f32 0.0, %v738
        %740 = vmatmul.bf16.gmra.mxu0 %v404
        %v741 = vpop.f32.mrf.mxu0
        %v742 = vadd.f32 0.0, %v741
        %v743 = vpop.f32.mrf.mxu0
        %v744 = vadd.f32 0.0, %v743
        %745 = vmatmul.bf16.gmra.mxu0 %v405
        %v746 = vpop.f32.mrf.mxu0
        %v747 = vadd.f32 0.0, %v746
        %v748 = vpop.f32.mrf.mxu0
        %v749 = vadd.f32 0.0, %v748
        %750 = vmatmul.bf16.gmra.mxu0 %v406
        %v751 = vpop.f32.mrf.mxu0
        %v752 = vadd.f32 0.0, %v751
        %v753 = vpop.f32.mrf.mxu0
        %v754 = vadd.f32 0.0, %v753
        %755 = vmatmul.bf16.gmra.mxu0 %v407
        %v756 = vpop.f32.mrf.mxu0
        %v757 = vadd.f32 0.0, %v756
        %v758 = vpop.f32.mrf.mxu0
        %v759 = vadd.f32 0.0, %v758
        %760 = vmatmul.bf16.gmra.mxu0 %v408
        %v761 = vpop.f32.mrf.mxu0
        %v762 = vadd.f32 0.0, %v761
        %v763 = vpop.f32.mrf.mxu0
        %v764 = vadd.f32 0.0, %v763
        %765 = vmatmul.bf16.gmra.mxu0 %v409
        %v766 = vpop.f32.mrf.mxu0
        %v767 = vadd.f32 0.0, %v766
        %v768 = vpop.f32.mrf.mxu0
        %v769 = vadd.f32 0.0, %v768
        %770 = vmatmul.bf16.gmra.mxu0 %v410
        %v771 = vpop.f32.mrf.mxu0
        %v772 = vadd.f32 0.0, %v771
        %v773 = vpop.f32.mrf.mxu0
        %v774 = vadd.f32 0.0, %v773
        %775 = vmatmul.bf16.gmra.mxu0 %v411
        %v776 = vpop.f32.mrf.mxu0
        %v777 = vadd.f32 0.0, %v776
        %v778 = vpop.f32.mrf.mxu0
        %v779 = vadd.f32 0.0, %v778
        %780 = vmatmul.bf16.gmra.mxu0 %v412
        %v781 = vpop.f32.mrf.mxu0
        %v782 = vadd.f32 0.0, %v781
        %v783 = vpop.f32.mrf.mxu0
        %v784 = vadd.f32 0.0, %v783
        %785 = vmatmul.bf16.gmra.mxu0 %v413
        %v786 = vpop.f32.mrf.mxu0
        %v787 = vadd.f32 0.0, %v786
        %v788 = vpop.f32.mrf.mxu0
        %v789 = vadd.f32 0.0, %v788
        %790 = vmatmul.bf16.gmra.mxu0 %v414
        %v791 = vpop.f32.mrf.mxu0
        %v792 = vadd.f32 0.0, %v791
        %v793 = vpop.f32.mrf.mxu0
        %v794 = vadd.f32 0.0, %v793
        %795 = vmatmul.bf16.gmra.mxu0 %v415
        %v796 = vpop.f32.mrf.mxu0
        %v797 = vadd.f32 0.0, %v796
        %v798 = vpop.f32.mrf.mxu0
        %v799 = vadd.f32 0.0, %v798
        %800 = vmatmul.bf16.gmra.mxu0 %v416
        %v801 = vpop.f32.mrf.mxu0
        %v802 = vadd.f32 0.0, %v801
        %v803 = vpop.f32.mrf.mxu0
        %v804 = vadd.f32 0.0, %v803
        %805 = vmatmul.bf16.gmra.mxu0 %v417
        %v806 = vpop.f32.mrf.mxu0
        %v807 = vadd.f32 0.0, %v806
        %v808 = vpop.f32.mrf.mxu0
        %v809 = vadd.f32 0.0, %v808
        %810 = vdwg.mxu0
        %811 = vmax.xlane.f32.xlu0 %v492
        %v812 = vpop.xlane.xlu0 %811
        %813 = vmax.xlane.f32.xlu0 %v494
        %v814 = vpop.xlane.xlu0 %813
        %815 = vmax.xlane.f32.xlu0 %v497
        %v816 = vpop.xlane.xlu0 %815
        %817 = vmax.xlane.f32.xlu0 %v499
        %v818 = vpop.xlane.xlu0 %817
        %819 = vmax.xlane.f32.xlu0 %v502
        %v820 = vpop.xlane.xlu0 %819
        %821 = vmax.xlane.f32.xlu0 %v504
        %v822 = vpop.xlane.xlu0 %821
        %823 = vmax.xlane.f32.xlu0 %v507
        %v824 = vpop.xlane.xlu0 %823
        %825 = vmax.xlane.f32.xlu0 %v509
        %v826 = vpop.xlane.xlu0 %825
        %827 = vmax.xlane.f32.xlu0 %v512
        %v828 = vpop.xlane.xlu0 %827
        %829 = vmax.xlane.f32.xlu0 %v514
        %v830 = vpop.xlane.xlu0 %829
        %831 = vmax.xlane.f32.xlu0 %v517
        %v832 = vpop.xlane.xlu0 %831
        %833 = vmax.xlane.f32.xlu0 %v519
        %v834 = vpop.xlane.xlu0 %833
        %835 = vmax.xlane.f32.xlu0 %v522
        %v836 = vpop.xlane.xlu0 %835
        %837 = vmax.xlane.f32.xlu0 %v524
        %v838 = vpop.xlane.xlu0 %837
        %839 = vmax.xlane.f32.xlu0 %v527
        %v840 = vpop.xlane.xlu0 %839
        %841 = vmax.xlane.f32.xlu0 %v529
        %v842 = vpop.xlane.xlu0 %841
        %843 = vmax.xlane.f32.xlu0 %v532
        %v844 = vpop.xlane.xlu0 %843
        %845 = vmax.xlane.f32.xlu0 %v534
        %v846 = vpop.xlane.xlu0 %845
        %847 = vmax.xlane.f32.xlu0 %v537
        %v848 = vpop.xlane.xlu0 %847
        %849 = vmax.xlane.f32.xlu0 %v539
        %v850 = vpop.xlane.xlu0 %849
        %851 = vmax.xlane.f32.xlu0 %v542
        %v852 = vpop.xlane.xlu0 %851
        %853 = vmax.xlane.f32.xlu0 %v544
        %v854 = vpop.xlane.xlu0 %853
        %855 = vmax.xlane.f32.xlu0 %v547
        %v856 = vpop.xlane.xlu0 %855
        %857 = vmax.xlane.f32.xlu0 %v549
        %v858 = vpop.xlane.xlu0 %857
        %859 = vmax.xlane.f32.xlu0 %v552
        %v860 = vpop.xlane.xlu0 %859
        %861 = vmax.xlane.f32.xlu0 %v554
        %v862 = vpop.xlane.xlu0 %861
        %863 = vmax.xlane.f32.xlu0 %v557
        %v864 = vpop.xlane.xlu0 %863
        %865 = vmax.xlane.f32.xlu0 %v559
        %v866 = vpop.xlane.xlu0 %865
        %867 = vmax.xlane.f32.xlu0 %v562
        %v868 = vpop.xlane.xlu0 %867
        %869 = vmax.xlane.f32.xlu0 %v564
        %v870 = vpop.xlane.xlu0 %869
        %871 = vmax.xlane.f32.xlu0 %v567
        %v872 = vpop.xlane.xlu0 %871
        %873 = vmax.xlane.f32.xlu0 %v569
        %v874 = vpop.xlane.xlu0 %873
        %875 = vmax.xlane.f32.xlu0 %v572
        %v876 = vpop.xlane.xlu0 %875
        %877 = vmax.xlane.f32.xlu0 %v574
        %v878 = vpop.xlane.xlu0 %877
        %879 = vmax.xlane.f32.xlu0 %v577
        %v880 = vpop.xlane.xlu0 %879
        %881 = vmax.xlane.f32.xlu0 %v579
        %v882 = vpop.xlane.xlu0 %881
        %883 = vmax.xlane.f32.xlu0 %v582
        %v884 = vpop.xlane.xlu0 %883
        %885 = vmax.xlane.f32.xlu0 %v584
        %v886 = vpop.xlane.xlu0 %885
        %887 = vmax.xlane.f32.xlu0 %v587
        %v888 = vpop.xlane.xlu0 %887
        %889 = vmax.xlane.f32.xlu0 %v589
        %v890 = vpop.xlane.xlu0 %889
        %891 = vmax.xlane.f32.xlu0 %v592
        %v892 = vpop.xlane.xlu0 %891
        %893 = vmax.xlane.f32.xlu0 %v594
        %v894 = vpop.xlane.xlu0 %893
        %895 = vmax.xlane.f32.xlu0 %v597
        %v896 = vpop.xlane.xlu0 %895
        %897 = vmax.xlane.f32.xlu0 %v599
        %v898 = vpop.xlane.xlu0 %897
        %899 = vmax.xlane.f32.xlu0 %v602
        %v900 = vpop.xlane.xlu0 %899
        %901 = vmax.xlane.f32.xlu0 %v604
        %v902 = vpop.xlane.xlu0 %901
        %903 = vmax.xlane.f32.xlu0 %v607
        %v904 = vpop.xlane.xlu0 %903
        %905 = vmax.xlane.f32.xlu0 %v609
        %v906 = vpop.xlane.xlu0 %905
        %907 = vmax.xlane.f32.xlu0 %v612
        %v908 = vpop.xlane.xlu0 %907
        %909 = vmax.xlane.f32.xlu0 %v614
        %v910 = vpop.xlane.xlu0 %909
        %911 = vmax.xlane.f32.xlu0 %v617
        %v912 = vpop.xlane.xlu0 %911
        %913 = vmax.xlane.f32.xlu0 %v619
        %v914 = vpop.xlane.xlu0 %913
        %915 = vmax.xlane.f32.xlu0 %v622
        %v916 = vpop.xlane.xlu0 %915
        %917 = vmax.xlane.f32.xlu0 %v624
        %v918 = vpop.xlane.xlu0 %917
        %919 = vmax.xlane.f32.xlu0 %v627
        %v920 = vpop.xlane.xlu0 %919
        %921 = vmax.xlane.f32.xlu0 %v629
        %v922 = vpop.xlane.xlu0 %921
        %923 = vmax.xlane.f32.xlu0 %v632
        %v924 = vpop.xlane.xlu0 %923
        %925 = vmax.xlane.f32.xlu0 %v634
        %v926 = vpop.xlane.xlu0 %925
        %927 = vmax.xlane.f32.xlu0 %v637
        %v928 = vpop.xlane.xlu0 %927
        %929 = vmax.xlane.f32.xlu0 %v639
        %v930 = vpop.xlane.xlu0 %929
        %931 = vmax.xlane.f32.xlu0 %v642
        %v932 = vpop.xlane.xlu0 %931
        %933 = vmax.xlane.f32.xlu0 %v644
        %v934 = vpop.xlane.xlu0 %933
        %935 = vmax.xlane.f32.xlu0 %v647
        %v936 = vpop.xlane.xlu0 %935
        %937 = vmax.xlane.f32.xlu0 %v649
        %v938 = vpop.xlane.xlu0 %937
        %939 = vmax.xlane.f32.xlu0 %v652
        %v940 = vpop.xlane.xlu0 %939
        %941 = vmax.xlane.f32.xlu0 %v654
        %v942 = vpop.xlane.xlu0 %941
        %943 = vmax.xlane.f32.xlu0 %v657
        %v944 = vpop.xlane.xlu0 %943
        %945 = vmax.xlane.f32.xlu0 %v659
        %v946 = vpop.xlane.xlu0 %945
        %947 = vmax.xlane.f32.xlu0 %v662
        %v948 = vpop.xlane.xlu0 %947
        %949 = vmax.xlane.f32.xlu0 %v664
        %v950 = vpop.xlane.xlu0 %949
        %951 = vmax.xlane.f32.xlu0 %v667
        %v952 = vpop.xlane.xlu0 %951
        %953 = vmax.xlane.f32.xlu0 %v669
        %v954 = vpop.xlane.xlu0 %953
        %955 = vmax.xlane.f32.xlu0 %v672
        %v956 = vpop.xlane.xlu0 %955
        %957 = vmax.xlane.f32.xlu0 %v674
        %v958 = vpop.xlane.xlu0 %957
        %959 = vmax.xlane.f32.xlu0 %v677
        %v960 = vpop.xlane.xlu0 %959
        %961 = vmax.xlane.f32.xlu0 %v679
        %v962 = vpop.xlane.xlu0 %961
        %963 = vmax.xlane.f32.xlu0 %v682
        %v964 = vpop.xlane.xlu0 %963
        %965 = vmax.xlane.f32.xlu0 %v684
        %v966 = vpop.xlane.xlu0 %965
        %967 = vmax.xlane.f32.xlu0 %v687
        %v968 = vpop.xlane.xlu0 %967
        %969 = vmax.xlane.f32.xlu0 %v689
        %v970 = vpop.xlane.xlu0 %969
        %971 = vmax.xlane.f32.xlu0 %v692
        %v972 = vpop.xlane.xlu0 %971
        %973 = vmax.xlane.f32.xlu0 %v694
        %v974 = vpop.xlane.xlu0 %973
        %975 = vmax.xlane.f32.xlu0 %v697
        %v976 = vpop.xlane.xlu0 %975
        %977 = vmax.xlane.f32.xlu0 %v699
        %v978 = vpop.xlane.xlu0 %977
        %979 = vmax.xlane.f32.xlu0 %v702
        %v980 = vpop.xlane.xlu0 %979
        %981 = vmax.xlane.f32.xlu0 %v704
        %v982 = vpop.xlane.xlu0 %981
        %983 = vmax.xlane.f32.xlu0 %v707
        %v984 = vpop.xlane.xlu0 %983
        %985 = vmax.xlane.f32.xlu0 %v709
        %v986 = vpop.xlane.xlu0 %985
        %987 = vmax.xlane.f32.xlu0 %v712
        %v988 = vpop.xlane.xlu0 %987
        %989 = vmax.xlane.f32.xlu0 %v714
        %v990 = vpop.xlane.xlu0 %989
        %991 = vmax.xlane.f32.xlu0 %v717
        %v992 = vpop.xlane.xlu0 %991
        %993 = vmax.xlane.f32.xlu0 %v719
        %v994 = vpop.xlane.xlu0 %993
        %995 = vmax.xlane.f32.xlu0 %v722
        %v996 = vpop.xlane.xlu0 %995
        %997 = vmax.xlane.f32.xlu0 %v724
        %v998 = vpop.xlane.xlu0 %997
        %999 = vmax.xlane.f32.xlu0 %v727
        %v1000 = vpop.xlane.xlu0 %999
        %1001 = vmax.xlane.f32.xlu0 %v729
        %v1002 = vpop.xlane.xlu0 %1001
        %1003 = vmax.xlane.f32.xlu0 %v732
        %v1004 = vpop.xlane.xlu0 %1003
        %1005 = vmax.xlane.f32.xlu0 %v734
        %v1006 = vpop.xlane.xlu0 %1005
        %1007 = vmax.xlane.f32.xlu0 %v737
        %v1008 = vpop.xlane.xlu0 %1007
        %1009 = vmax.xlane.f32.xlu0 %v739
        %v1010 = vpop.xlane.xlu0 %1009
        %1011 = vmax.xlane.f32.xlu0 %v742
        %v1012 = vpop.xlane.xlu0 %1011
        %1013 = vmax.xlane.f32.xlu0 %v744
        %v1014 = vpop.xlane.xlu0 %1013
        %1015 = vmax.xlane.f32.xlu0 %v747
        %v1016 = vpop.xlane.xlu0 %1015
        %1017 = vmax.xlane.f32.xlu0 %v749
        %v1018 = vpop.xlane.xlu0 %1017
        %1019 = vmax.xlane.f32.xlu0 %v752
        %v1020 = vpop.xlane.xlu0 %1019
        %1021 = vmax.xlane.f32.xlu0 %v754
        %v1022 = vpop.xlane.xlu0 %1021
        %1023 = vmax.xlane.f32.xlu0 %v757
        %v1024 = vpop.xlane.xlu0 %1023
        %1025 = vmax.xlane.f32.xlu0 %v759
        %v1026 = vpop.xlane.xlu0 %1025
        %1027 = vmax.xlane.f32.xlu0 %v762
        %v1028 = vpop.xlane.xlu0 %1027
        %1029 = vmax.xlane.f32.xlu0 %v764
        %v1030 = vpop.xlane.xlu0 %1029
        %1031 = vmax.xlane.f32.xlu0 %v767
        %v1032 = vpop.xlane.xlu0 %1031
        %1033 = vmax.xlane.f32.xlu0 %v769
        %v1034 = vpop.xlane.xlu0 %1033
        %1035 = vmax.xlane.f32.xlu0 %v772
        %v1036 = vpop.xlane.xlu0 %1035
        %1037 = vmax.xlane.f32.xlu0 %v774
        %v1038 = vpop.xlane.xlu0 %1037
        %1039 = vmax.xlane.f32.xlu0 %v777
        %v1040 = vpop.xlane.xlu0 %1039
        %1041 = vmax.xlane.f32.xlu0 %v779
        %v1042 = vpop.xlane.xlu0 %1041
        %1043 = vmax.xlane.f32.xlu0 %v782
        %v1044 = vpop.xlane.xlu0 %1043
        %1045 = vmax.xlane.f32.xlu0 %v784
        %v1046 = vpop.xlane.xlu0 %1045
        %1047 = vmax.xlane.f32.xlu0 %v787
        %v1048 = vpop.xlane.xlu0 %1047
        %1049 = vmax.xlane.f32.xlu0 %v789
        %v1050 = vpop.xlane.xlu0 %1049
        %1051 = vmax.xlane.f32.xlu0 %v792
        %v1052 = vpop.xlane.xlu0 %1051
        %1053 = vmax.xlane.f32.xlu0 %v794
        %v1054 = vpop.xlane.xlu0 %1053
        %1055 = vmax.xlane.f32.xlu0 %v797
        %v1056 = vpop.xlane.xlu0 %1055
        %1057 = vmax.xlane.f32.xlu0 %v799
        %v1058 = vpop.xlane.xlu0 %1057
        %1059 = vmax.xlane.f32.xlu0 %v802
        %v1060 = vpop.xlane.xlu0 %1059
        %1061 = vmax.xlane.f32.xlu0 %v804
        %v1062 = vpop.xlane.xlu0 %1061
        %1063 = vmax.xlane.f32.xlu0 %v807
        %v1064 = vpop.xlane.xlu0 %1063
        %1065 = vmax.xlane.f32.xlu0 %v809
        %v1066 = vpop.xlane.xlu0 %1065
        %v1067 = vsub.f32 %v492, %v812
        %v1068 = vsub.f32 %v494, %v814
        %v1069 = vsub.f32 %v497, %v816
        %v1070 = vsub.f32 %v499, %v818
        %v1071 = vsub.f32 %v502, %v820
        %v1072 = vsub.f32 %v504, %v822
        %v1073 = vsub.f32 %v507, %v824
        %v1074 = vsub.f32 %v509, %v826
        %v1075 = vsub.f32 %v512, %v828
        %v1076 = vsub.f32 %v514, %v830
        %v1077 = vsub.f32 %v517, %v832
        %v1078 = vsub.f32 %v519, %v834
        %v1079 = vsub.f32 %v522, %v836
        %v1080 = vsub.f32 %v524, %v838
        %v1081 = vsub.f32 %v527, %v840
        %v1082 = vsub.f32 %v529, %v842
        %v1083 = vsub.f32 %v532, %v844
        %v1084 = vsub.f32 %v534, %v846
        %v1085 = vsub.f32 %v537, %v848
        %v1086 = vsub.f32 %v539, %v850
        %v1087 = vsub.f32 %v542, %v852
        %v1088 = vsub.f32 %v544, %v854
        %v1089 = vsub.f32 %v547, %v856
        %v1090 = vsub.f32 %v549, %v858
        %v1091 = vsub.f32 %v552, %v860
        %v1092 = vsub.f32 %v554, %v862
        %v1093 = vsub.f32 %v557, %v864
        %v1094 = vsub.f32 %v559, %v866
        %v1095 = vsub.f32 %v562, %v868
        %v1096 = vsub.f32 %v564, %v870
        %v1097 = vsub.f32 %v567, %v872
        %v1098 = vsub.f32 %v569, %v874
        %v1099 = vsub.f32 %v572, %v876
        %v1100 = vsub.f32 %v574, %v878
        %v1101 = vsub.f32 %v577, %v880
        %v1102 = vsub.f32 %v579, %v882
        %v1103 = vsub.f32 %v582, %v884
        %v1104 = vsub.f32 %v584, %v886
        %v1105 = vsub.f32 %v587, %v888
        %v1106 = vsub.f32 %v589, %v890
        %v1107 = vsub.f32 %v592, %v892
        %v1108 = vsub.f32 %v594, %v894
        %v1109 = vsub.f32 %v597, %v896
        %v1110 = vsub.f32 %v599, %v898
        %v1111 = vsub.f32 %v602, %v900
        %v1112 = vsub.f32 %v604, %v902
        %v1113 = vsub.f32 %v607, %v904
        %v1114 = vsub.f32 %v609, %v906
        %v1115 = vsub.f32 %v612, %v908
        %v1116 = vsub.f32 %v614, %v910
        %v1117 = vsub.f32 %v617, %v912
        %v1118 = vsub.f32 %v619, %v914
        %v1119 = vsub.f32 %v622, %v916
        %v1120 = vsub.f32 %v624, %v918
        %v1121 = vsub.f32 %v627, %v920
        %v1122 = vsub.f32 %v629, %v922
        %v1123 = vsub.f32 %v632, %v924
        %v1124 = vsub.f32 %v634, %v926
        %v1125 = vsub.f32 %v637, %v928
        %v1126 = vsub.f32 %v639, %v930
        %v1127 = vsub.f32 %v642, %v932
        %v1128 = vsub.f32 %v644, %v934
        %v1129 = vsub.f32 %v647, %v936
        %v1130 = vsub.f32 %v649, %v938
        %v1131 = vsub.f32 %v652, %v940
        %v1132 = vsub.f32 %v654, %v942
        %v1133 = vsub.f32 %v657, %v944
        %v1134 = vsub.f32 %v659, %v946
        %v1135 = vsub.f32 %v662, %v948
        %v1136 = vsub.f32 %v664, %v950
        %v1137 = vsub.f32 %v667, %v952
        %v1138 = vsub.f32 %v669, %v954
        %v1139 = vsub.f32 %v672, %v956
        %v1140 = vsub.f32 %v674, %v958
        %v1141 = vsub.f32 %v677, %v960
        %v1142 = vsub.f32 %v679, %v962
        %v1143 = vsub.f32 %v682, %v964
        %v1144 = vsub.f32 %v684, %v966
        %v1145 = vsub.f32 %v687, %v968
        %v1146 = vsub.f32 %v689, %v970
        %v1147 = vsub.f32 %v692, %v972
        %v1148 = vsub.f32 %v694, %v974
        %v1149 = vsub.f32 %v697, %v976
        %v1150 = vsub.f32 %v699, %v978
        %v1151 = vsub.f32 %v702, %v980
        %v1152 = vsub.f32 %v704, %v982
        %v1153 = vsub.f32 %v707, %v984
        %v1154 = vsub.f32 %v709, %v986
        %v1155 = vsub.f32 %v712, %v988
        %v1156 = vsub.f32 %v714, %v990
        %v1157 = vsub.f32 %v717, %v992
        %v1158 = vsub.f32 %v719, %v994
        %v1159 = vsub.f32 %v722, %v996
        %v1160 = vsub.f32 %v724, %v998
        %v1161 = vsub.f32 %v727, %v1000
        %v1162 = vsub.f32 %v729, %v1002
        %v1163 = vsub.f32 %v732, %v1004
        %v1164 = vsub.f32 %v734, %v1006
        %v1165 = vsub.f32 %v737, %v1008
        %v1166 = vsub.f32 %v739, %v1010
        %v1167 = vsub.f32 %v742, %v1012
        %v1168 = vsub.f32 %v744, %v1014
        %v1169 = vsub.f32 %v747, %v1016
        %v1170 = vsub.f32 %v749, %v1018
        %v1171 = vsub.f32 %v752, %v1020
        %v1172 = vsub.f32 %v754, %v1022
        %v1173 = vsub.f32 %v757, %v1024
        %v1174 = vsub.f32 %v759, %v1026
        %v1175 = vsub.f32 %v762, %v1028
        %v1176 = vsub.f32 %v764, %v1030
        %v1177 = vsub.f32 %v767, %v1032
        %v1178 = vsub.f32 %v769, %v1034
        %v1179 = vsub.f32 %v772, %v1036
        %v1180 = vsub.f32 %v774, %v1038
        %v1181 = vsub.f32 %v777, %v1040
        %v1182 = vsub.f32 %v779, %v1042
        %v1183 = vsub.f32 %v782, %v1044
        %v1184 = vsub.f32 %v784, %v1046
        %v1185 = vsub.f32 %v787, %v1048
        %v1186 = vsub.f32 %v789, %v1050
        %v1187 = vsub.f32 %v792, %v1052
        %v1188 = vsub.f32 %v794, %v1054
        %v1189 = vsub.f32 %v797, %v1056
        %v1190 = vsub.f32 %v799, %v1058
        %v1191 = vsub.f32 %v802, %v1060
        %v1192 = vsub.f32 %v804, %v1062
        %v1193 = vsub.f32 %v807, %v1064
        %v1194 = vsub.f32 %v809, %v1066
        %v1195 = vmul.f32 %v1067, 1.442695
        %v1196 = vpow.pop %v1195
        %v1197 = vmul.f32 %v1068, 1.442695
        %v1198 = vpow.pop %v1197
        %v1199 = vmul.f32 %v1069, 1.442695
        %v1200 = vpow.pop %v1199
        %v1201 = vmul.f32 %v1070, 1.442695
        %v1202 = vpow.pop %v1201
        %v1203 = vmul.f32 %v1071, 1.442695
        %v1204 = vpow.pop %v1203
        %v1205 = vmul.f32 %v1072, 1.442695
        %v1206 = vpow.pop %v1205
        %v1207 = vmul.f32 %v1073, 1.442695
        %v1208 = vpow.pop %v1207
        %v1209 = vmul.f32 %v1074, 1.442695
        %v1210 = vpow.pop %v1209
        %v1211 = vmul.f32 %v1075, 1.442695
        %v1212 = vpow.pop %v1211
        %v1213 = vmul.f32 %v1076, 1.442695
        %v1214 = vpow.pop %v1213
        %v1215 = vmul.f32 %v1077, 1.442695
        %v1216 = vpow.pop %v1215
        %v1217 = vmul.f32 %v1078, 1.442695
        %v1218 = vpow.pop %v1217
        %v1219 = vmul.f32 %v1079, 1.442695
        %v1220 = vpow.pop %v1219
        %v1221 = vmul.f32 %v1080, 1.442695
        %v1222 = vpow.pop %v1221
        %v1223 = vmul.f32 %v1081, 1.442695
        %v1224 = vpow.pop %v1223
        %v1225 = vmul.f32 %v1082, 1.442695
        %v1226 = vpow.pop %v1225
        %v1227 = vmul.f32 %v1083, 1.442695
        %v1228 = vpow.pop %v1227
        %v1229 = vmul.f32 %v1084, 1.442695
        %v1230 = vpow.pop %v1229
        %v1231 = vmul.f32 %v1085, 1.442695
        %v1232 = vpow.pop %v1231
        %v1233 = vmul.f32 %v1086, 1.442695
        %v1234 = vpow.pop %v1233
        %v1235 = vmul.f32 %v1087, 1.442695
        %v1236 = vpow.pop %v1235
        %v1237 = vmul.f32 %v1088, 1.442695
        %v1238 = vpow.pop %v1237
        %v1239 = vmul.f32 %v1089, 1.442695
        %v1240 = vpow.pop %v1239
        %v1241 = vmul.f32 %v1090, 1.442695
        %v1242 = vpow.pop %v1241
        %v1243 = vmul.f32 %v1091, 1.442695
        %v1244 = vpow.pop %v1243
        %v1245 = vmul.f32 %v1092, 1.442695
        %v1246 = vpow.pop %v1245
        %v1247 = vmul.f32 %v1093, 1.442695
        %v1248 = vpow.pop %v1247
        %v1249 = vmul.f32 %v1094, 1.442695
        %v1250 = vpow.pop %v1249
        %v1251 = vmul.f32 %v1095, 1.442695
        %v1252 = vpow.pop %v1251
        %v1253 = vmul.f32 %v1096, 1.442695
        %v1254 = vpow.pop %v1253
        %v1255 = vmul.f32 %v1097, 1.442695
        %v1256 = vpow.pop %v1255
        %v1257 = vmul.f32 %v1098, 1.442695
        %v1258 = vpow.pop %v1257
        %v1259 = vmul.f32 %v1099, 1.442695
        %v1260 = vpow.pop %v1259
        %v1261 = vmul.f32 %v1100, 1.442695
        %v1262 = vpow.pop %v1261
        %v1263 = vmul.f32 %v1101, 1.442695
        %v1264 = vpow.pop %v1263
        %v1265 = vmul.f32 %v1102, 1.442695
        %v1266 = vpow.pop %v1265
        %v1267 = vmul.f32 %v1103, 1.442695
        %v1268 = vpow.pop %v1267
        %v1269 = vmul.f32 %v1104, 1.442695
        %v1270 = vpow.pop %v1269
        %v1271 = vmul.f32 %v1105, 1.442695
        %v1272 = vpow.pop %v1271
        %v1273 = vmul.f32 %v1106, 1.442695
        %v1274 = vpow.pop %v1273
        %v1275 = vmul.f32 %v1107, 1.442695
        %v1276 = vpow.pop %v1275
        %v1277 = vmul.f32 %v1108, 1.442695
        %v1278 = vpow.pop %v1277
        %v1279 = vmul.f32 %v1109, 1.442695
        %v1280 = vpow.pop %v1279
        %v1281 = vmul.f32 %v1110, 1.442695
        %v1282 = vpow.pop %v1281
        %v1283 = vmul.f32 %v1111, 1.442695
        %v1284 = vpow.pop %v1283
        %v1285 = vmul.f32 %v1112, 1.442695
        %v1286 = vpow.pop %v1285
        %v1287 = vmul.f32 %v1113, 1.442695
        %v1288 = vpow.pop %v1287
        %v1289 = vmul.f32 %v1114, 1.442695
        %v1290 = vpow.pop %v1289
        %v1291 = vmul.f32 %v1115, 1.442695
        %v1292 = vpow.pop %v1291
        %v1293 = vmul.f32 %v1116, 1.442695
        %v1294 = vpow.pop %v1293
        %v1295 = vmul.f32 %v1117, 1.442695
        %v1296 = vpow.pop %v1295
        %v1297 = vmul.f32 %v1118, 1.442695
        %v1298 = vpow.pop %v1297
        %v1299 = vmul.f32 %v1119, 1.442695
        %v1300 = vpow.pop %v1299
        %v1301 = vmul.f32 %v1120, 1.442695
        %v1302 = vpow.pop %v1301
        %v1303 = vmul.f32 %v1121, 1.442695
        %v1304 = vpow.pop %v1303
        %v1305 = vmul.f32 %v1122, 1.442695
        %v1306 = vpow.pop %v1305
        %v1307 = vmul.f32 %v1123, 1.442695
        %v1308 = vpow.pop %v1307
        %v1309 = vmul.f32 %v1124, 1.442695
        %v1310 = vpow.pop %v1309
        %v1311 = vmul.f32 %v1125, 1.442695
        %v1312 = vpow.pop %v1311
        %v1313 = vmul.f32 %v1126, 1.442695
        %v1314 = vpow.pop %v1313
        %v1315 = vmul.f32 %v1127, 1.442695
        %v1316 = vpow.pop %v1315
        %v1317 = vmul.f32 %v1128, 1.442695
        %v1318 = vpow.pop %v1317
        %v1319 = vmul.f32 %v1129, 1.442695
        %v1320 = vpow.pop %v1319
        %v1321 = vmul.f32 %v1130, 1.442695
        %v1322 = vpow.pop %v1321
        %v1323 = vmul.f32 %v1131, 1.442695
        %v1324 = vpow.pop %v1323
        %v1325 = vmul.f32 %v1132, 1.442695
        %v1326 = vpow.pop %v1325
        %v1327 = vmul.f32 %v1133, 1.442695
        %v1328 = vpow.pop %v1327
        %v1329 = vmul.f32 %v1134, 1.442695
        %v1330 = vpow.pop %v1329
        %v1331 = vmul.f32 %v1135, 1.442695
        %v1332 = vpow.pop %v1331
        %v1333 = vmul.f32 %v1136, 1.442695
        %v1334 = vpow.pop %v1333
        %v1335 = vmul.f32 %v1137, 1.442695
        %v1336 = vpow.pop %v1335
        %v1337 = vmul.f32 %v1138, 1.442695
        %v1338 = vpow.pop %v1337
        %v1339 = vmul.f32 %v1139, 1.442695
        %v1340 = vpow.pop %v1339
        %v1341 = vmul.f32 %v1140, 1.442695
        %v1342 = vpow.pop %v1341
        %v1343 = vmul.f32 %v1141, 1.442695
        %v1344 = vpow.pop %v1343
        %v1345 = vmul.f32 %v1142, 1.442695
        %v1346 = vpow.pop %v1345
        %v1347 = vmul.f32 %v1143, 1.442695
        %v1348 = vpow.pop %v1347
        %v1349 = vmul.f32 %v1144, 1.442695
        %v1350 = vpow.pop %v1349
        %v1351 = vmul.f32 %v1145, 1.442695
        %v1352 = vpow.pop %v1351
        %v1353 = vmul.f32 %v1146, 1.442695
        %v1354 = vpow.pop %v1353
        %v1355 = vmul.f32 %v1147, 1.442695
        %v1356 = vpow.pop %v1355
        %v1357 = vmul.f32 %v1148, 1.442695
        %v1358 = vpow.pop %v1357
        %v1359 = vmul.f32 %v1149, 1.442695
        %v1360 = vpow.pop %v1359
        %v1361 = vmul.f32 %v1150, 1.442695
        %v1362 = vpow.pop %v1361
        %v1363 = vmul.f32 %v1151, 1.442695
        %v1364 = vpow.pop %v1363
        %v1365 = vmul.f32 %v1152, 1.442695
        %v1366 = vpow.pop %v1365
        %v1367 = vmul.f32 %v1153, 1.442695
        %v1368 = vpow.pop %v1367
        %v1369 = vmul.f32 %v1154, 1.442695
        %v1370 = vpow.pop %v1369
        %v1371 = vmul.f32 %v1155, 1.442695
        %v1372 = vpow.pop %v1371
        %v1373 = vmul.f32 %v1156, 1.442695
        %v1374 = vpow.pop %v1373
        %v1375 = vmul.f32 %v1157, 1.442695
        %v1376 = vpow.pop %v1375
        %v1377 = vmul.f32 %v1158, 1.442695
        %v1378 = vpow.pop %v1377
        %v1379 = vmul.f32 %v1159, 1.442695
        %v1380 = vpow.pop %v1379
        %v1381 = vmul.f32 %v1160, 1.442695
        %v1382 = vpow.pop %v1381
        %v1383 = vmul.f32 %v1161, 1.442695
        %v1384 = vpow.pop %v1383
        %v1385 = vmul.f32 %v1162, 1.442695
        %v1386 = vpow.pop %v1385
        %v1387 = vmul.f32 %v1163, 1.442695
        %v1388 = vpow.pop %v1387
        %v1389 = vmul.f32 %v1164, 1.442695
        %v1390 = vpow.pop %v1389
        %v1391 = vmul.f32 %v1165, 1.442695
        %v1392 = vpow.pop %v1391
        %v1393 = vmul.f32 %v1166, 1.442695
        %v1394 = vpow.pop %v1393
        %v1395 = vmul.f32 %v1167, 1.442695
        %v1396 = vpow.pop %v1395
        %v1397 = vmul.f32 %v1168, 1.442695
        %v1398 = vpow.pop %v1397
        %v1399 = vmul.f32 %v1169, 1.442695
        %v1400 = vpow.pop %v1399
        %v1401 = vmul.f32 %v1170, 1.442695
        %v1402 = vpow.pop %v1401
        %v1403 = vmul.f32 %v1171, 1.442695
        %v1404 = vpow.pop %v1403
        %v1405 = vmul.f32 %v1172, 1.442695
        %v1406 = vpow.pop %v1405
        %v1407 = vmul.f32 %v1173, 1.442695
        %v1408 = vpow.pop %v1407
        %v1409 = vmul.f32 %v1174, 1.442695
        %v1410 = vpow.pop %v1409
        %v1411 = vmul.f32 %v1175, 1.442695
        %v1412 = vpow.pop %v1411
        %v1413 = vmul.f32 %v1176, 1.442695
        %v1414 = vpow.pop %v1413
        %v1415 = vmul.f32 %v1177, 1.442695
        %v1416 = vpow.pop %v1415
        %v1417 = vmul.f32 %v1178, 1.442695
        %v1418 = vpow.pop %v1417
        %v1419 = vmul.f32 %v1179, 1.442695
        %v1420 = vpow.pop %v1419
        %v1421 = vmul.f32 %v1180, 1.442695
        %v1422 = vpow.pop %v1421
        %v1423 = vmul.f32 %v1181, 1.442695
        %v1424 = vpow.pop %v1423
        %v1425 = vmul.f32 %v1182, 1.442695
        %v1426 = vpow.pop %v1425
        %v1427 = vmul.f32 %v1183, 1.442695
        %v1428 = vpow.pop %v1427
        %v1429 = vmul.f32 %v1184, 1.442695
        %v1430 = vpow.pop %v1429
        %v1431 = vmul.f32 %v1185, 1.442695
        %v1432 = vpow.pop %v1431
        %v1433 = vmul.f32 %v1186, 1.442695
        %v1434 = vpow.pop %v1433
        %v1435 = vmul.f32 %v1187, 1.442695
        %v1436 = vpow.pop %v1435
        %v1437 = vmul.f32 %v1188, 1.442695
        %v1438 = vpow.pop %v1437
        %v1439 = vmul.f32 %v1189, 1.442695
        %v1440 = vpow.pop %v1439
        %v1441 = vmul.f32 %v1190, 1.442695
        %v1442 = vpow.pop %v1441
        %v1443 = vmul.f32 %v1191, 1.442695
        %v1444 = vpow.pop %v1443
        %v1445 = vmul.f32 %v1192, 1.442695
        %v1446 = vpow.pop %v1445
        %v1447 = vmul.f32 %v1193, 1.442695
        %v1448 = vpow.pop %v1447
        %v1449 = vmul.f32 %v1194, 1.442695
        %v1450 = vpow.pop %v1449
        %1451 = vadd.xlane.f32.xlu0 %v1196
        %v1452 = vpop.xlane.xlu0 %1451
        %1453 = vadd.xlane.f32.xlu0 %v1198
        %v1454 = vpop.xlane.xlu0 %1453
        %1455 = vadd.xlane.f32.xlu0 %v1200
        %v1456 = vpop.xlane.xlu0 %1455
        %1457 = vadd.xlane.f32.xlu0 %v1202
        %v1458 = vpop.xlane.xlu0 %1457
        %1459 = vadd.xlane.f32.xlu0 %v1204
        %v1460 = vpop.xlane.xlu0 %1459
        %1461 = vadd.xlane.f32.xlu0 %v1206
        %v1462 = vpop.xlane.xlu0 %1461
        %1463 = vadd.xlane.f32.xlu0 %v1208
        %v1464 = vpop.xlane.xlu0 %1463
        %1465 = vadd.xlane.f32.xlu0 %v1210
        %v1466 = vpop.xlane.xlu0 %1465
        %1467 = vadd.xlane.f32.xlu0 %v1212
        %v1468 = vpop.xlane.xlu0 %1467
        %1469 = vadd.xlane.f32.xlu0 %v1214
        %v1470 = vpop.xlane.xlu0 %1469
        %1471 = vadd.xlane.f32.xlu0 %v1216
        %v1472 = vpop.xlane.xlu0 %1471
        %1473 = vadd.xlane.f32.xlu0 %v1218
        %v1474 = vpop.xlane.xlu0 %1473
        %1475 = vadd.xlane.f32.xlu0 %v1220
        %v1476 = vpop.xlane.xlu0 %1475
        %1477 = vadd.xlane.f32.xlu0 %v1222
        %v1478 = vpop.xlane.xlu0 %1477
        %1479 = vadd.xlane.f32.xlu0 %v1224
        %v1480 = vpop.xlane.xlu0 %1479
        %1481 = vadd.xlane.f32.xlu0 %v1226
        %v1482 = vpop.xlane.xlu0 %1481
        %1483 = vadd.xlane.f32.xlu0 %v1228
        %v1484 = vpop.xlane.xlu0 %1483
        %1485 = vadd.xlane.f32.xlu0 %v1230
        %v1486 = vpop.xlane.xlu0 %1485
        %1487 = vadd.xlane.f32.xlu0 %v1232
        %v1488 = vpop.xlane.xlu0 %1487
        %1489 = vadd.xlane.f32.xlu0 %v1234
        %v1490 = vpop.xlane.xlu0 %1489
        %1491 = vadd.xlane.f32.xlu0 %v1236
        %v1492 = vpop.xlane.xlu0 %1491
        %1493 = vadd.xlane.f32.xlu0 %v1238
        %v1494 = vpop.xlane.xlu0 %1493
        %1495 = vadd.xlane.f32.xlu0 %v1240
        %v1496 = vpop.xlane.xlu0 %1495
        %1497 = vadd.xlane.f32.xlu0 %v1242
        %v1498 = vpop.xlane.xlu0 %1497
        %1499 = vadd.xlane.f32.xlu0 %v1244
        %v1500 = vpop.xlane.xlu0 %1499
        %1501 = vadd.xlane.f32.xlu0 %v1246
        %v1502 = vpop.xlane.xlu0 %1501
        %1503 = vadd.xlane.f32.xlu0 %v1248
        %v1504 = vpop.xlane.xlu0 %1503
        %1505 = vadd.xlane.f32.xlu0 %v1250
        %v1506 = vpop.xlane.xlu0 %1505
        %1507 = vadd.xlane.f32.xlu0 %v1252
        %v1508 = vpop.xlane.xlu0 %1507
        %1509 = vadd.xlane.f32.xlu0 %v1254
        %v1510 = vpop.xlane.xlu0 %1509
        %1511 = vadd.xlane.f32.xlu0 %v1256
        %v1512 = vpop.xlane.xlu0 %1511
        %1513 = vadd.xlane.f32.xlu0 %v1258
        %v1514 = vpop.xlane.xlu0 %1513
        %1515 = vadd.xlane.f32.xlu0 %v1260
        %v1516 = vpop.xlane.xlu0 %1515
        %1517 = vadd.xlane.f32.xlu0 %v1262
        %v1518 = vpop.xlane.xlu0 %1517
        %1519 = vadd.xlane.f32.xlu0 %v1264
        %v1520 = vpop.xlane.xlu0 %1519
        %1521 = vadd.xlane.f32.xlu0 %v1266
        %v1522 = vpop.xlane.xlu0 %1521
        %1523 = vadd.xlane.f32.xlu0 %v1268
        %v1524 = vpop.xlane.xlu0 %1523
        %1525 = vadd.xlane.f32.xlu0 %v1270
        %v1526 = vpop.xlane.xlu0 %1525
        %1527 = vadd.xlane.f32.xlu0 %v1272
        %v1528 = vpop.xlane.xlu0 %1527
        %1529 = vadd.xlane.f32.xlu0 %v1274
        %v1530 = vpop.xlane.xlu0 %1529
        %1531 = vadd.xlane.f32.xlu0 %v1276
        %v1532 = vpop.xlane.xlu0 %1531
        %1533 = vadd.xlane.f32.xlu0 %v1278
        %v1534 = vpop.xlane.xlu0 %1533
        %1535 = vadd.xlane.f32.xlu0 %v1280
        %v1536 = vpop.xlane.xlu0 %1535
        %1537 = vadd.xlane.f32.xlu0 %v1282
        %v1538 = vpop.xlane.xlu0 %1537
        %1539 = vadd.xlane.f32.xlu0 %v1284
        %v1540 = vpop.xlane.xlu0 %1539
        %1541 = vadd.xlane.f32.xlu0 %v1286
        %v1542 = vpop.xlane.xlu0 %1541
        %1543 = vadd.xlane.f32.xlu0 %v1288
        %v1544 = vpop.xlane.xlu0 %1543
        %1545 = vadd.xlane.f32.xlu0 %v1290
        %v1546 = vpop.xlane.xlu0 %1545
        %1547 = vadd.xlane.f32.xlu0 %v1292
        %v1548 = vpop.xlane.xlu0 %1547
        %1549 = vadd.xlane.f32.xlu0 %v1294
        %v1550 = vpop.xlane.xlu0 %1549
        %1551 = vadd.xlane.f32.xlu0 %v1296
        %v1552 = vpop.xlane.xlu0 %1551
        %1553 = vadd.xlane.f32.xlu0 %v1298
        %v1554 = vpop.xlane.xlu0 %1553
        %1555 = vadd.xlane.f32.xlu0 %v1300
        %v1556 = vpop.xlane.xlu0 %1555
        %1557 = vadd.xlane.f32.xlu0 %v1302
        %v1558 = vpop.xlane.xlu0 %1557
        %1559 = vadd.xlane.f32.xlu0 %v1304
        %v1560 = vpop.xlane.xlu0 %1559
        %1561 = vadd.xlane.f32.xlu0 %v1306
        %v1562 = vpop.xlane.xlu0 %1561
        %1563 = vadd.xlane.f32.xlu0 %v1308
        %v1564 = vpop.xlane.xlu0 %1563
        %1565 = vadd.xlane.f32.xlu0 %v1310
        %v1566 = vpop.xlane.xlu0 %1565
        %1567 = vadd.xlane.f32.xlu0 %v1312
        %v1568 = vpop.xlane.xlu0 %1567
        %1569 = vadd.xlane.f32.xlu0 %v1314
        %v1570 = vpop.xlane.xlu0 %1569
        %1571 = vadd.xlane.f32.xlu0 %v1316
        %v1572 = vpop.xlane.xlu0 %1571
        %1573 = vadd.xlane.f32.xlu0 %v1318
        %v1574 = vpop.xlane.xlu0 %1573
        %1575 = vadd.xlane.f32.xlu0 %v1320
        %v1576 = vpop.xlane.xlu0 %1575
        %1577 = vadd.xlane.f32.xlu0 %v1322
        %v1578 = vpop.xlane.xlu0 %1577
        %1579 = vadd.xlane.f32.xlu0 %v1324
        %v1580 = vpop.xlane.xlu0 %1579
        %1581 = vadd.xlane.f32.xlu0 %v1326
        %v1582 = vpop.xlane.xlu0 %1581
        %1583 = vadd.xlane.f32.xlu0 %v1328
        %v1584 = vpop.xlane.xlu0 %1583
        %1585 = vadd.xlane.f32.xlu0 %v1330
        %v1586 = vpop.xlane.xlu0 %1585
        %1587 = vadd.xlane.f32.xlu0 %v1332
        %v1588 = vpop.xlane.xlu0 %1587
        %1589 = vadd.xlane.f32.xlu0 %v1334
        %v1590 = vpop.xlane.xlu0 %1589
        %1591 = vadd.xlane.f32.xlu0 %v1336
        %v1592 = vpop.xlane.xlu0 %1591
        %1593 = vadd.xlane.f32.xlu0 %v1338
        %v1594 = vpop.xlane.xlu0 %1593
        %1595 = vadd.xlane.f32.xlu0 %v1340
        %v1596 = vpop.xlane.xlu0 %1595
        %1597 = vadd.xlane.f32.xlu0 %v1342
        %v1598 = vpop.xlane.xlu0 %1597
        %1599 = vadd.xlane.f32.xlu0 %v1344
        %v1600 = vpop.xlane.xlu0 %1599
        %1601 = vadd.xlane.f32.xlu0 %v1346
        %v1602 = vpop.xlane.xlu0 %1601
        %1603 = vadd.xlane.f32.xlu0 %v1348
        %v1604 = vpop.xlane.xlu0 %1603
        %1605 = vadd.xlane.f32.xlu0 %v1350
        %v1606 = vpop.xlane.xlu0 %1605
        %1607 = vadd.xlane.f32.xlu0 %v1352
        %v1608 = vpop.xlane.xlu0 %1607
        %1609 = vadd.xlane.f32.xlu0 %v1354
        %v1610 = vpop.xlane.xlu0 %1609
        %1611 = vadd.xlane.f32.xlu0 %v1356
        %v1612 = vpop.xlane.xlu0 %1611
        %1613 = vadd.xlane.f32.xlu0 %v1358
        %v1614 = vpop.xlane.xlu0 %1613
        %1615 = vadd.xlane.f32.xlu0 %v1360
        %v1616 = vpop.xlane.xlu0 %1615
        %1617 = vadd.xlane.f32.xlu0 %v1362
        %v1618 = vpop.xlane.xlu0 %1617
        %1619 = vadd.xlane.f32.xlu0 %v1364
        %v1620 = vpop.xlane.xlu0 %1619
        %1621 = vadd.xlane.f32.xlu0 %v1366
        %v1622 = vpop.xlane.xlu0 %1621
        %1623 = vadd.xlane.f32.xlu0 %v1368
        %v1624 = vpop.xlane.xlu0 %1623
        %1625 = vadd.xlane.f32.xlu0 %v1370
        %v1626 = vpop.xlane.xlu0 %1625
        %1627 = vadd.xlane.f32.xlu0 %v1372
        %v1628 = vpop.xlane.xlu0 %1627
        %1629 = vadd.xlane.f32.xlu0 %v1374
        %v1630 = vpop.xlane.xlu0 %1629
        %1631 = vadd.xlane.f32.xlu0 %v1376
        %v1632 = vpop.xlane.xlu0 %1631
        %1633 = vadd.xlane.f32.xlu0 %v1378
        %v1634 = vpop.xlane.xlu0 %1633
        %1635 = vadd.xlane.f32.xlu0 %v1380
        %v1636 = vpop.xlane.xlu0 %1635
        %1637 = vadd.xlane.f32.xlu0 %v1382
        %v1638 = vpop.xlane.xlu0 %1637
        %1639 = vadd.xlane.f32.xlu0 %v1384
        %v1640 = vpop.xlane.xlu0 %1639
        %1641 = vadd.xlane.f32.xlu0 %v1386
        %v1642 = vpop.xlane.xlu0 %1641
        %1643 = vadd.xlane.f32.xlu0 %v1388
        %v1644 = vpop.xlane.xlu0 %1643
        %1645 = vadd.xlane.f32.xlu0 %v1390
        %v1646 = vpop.xlane.xlu0 %1645
        %1647 = vadd.xlane.f32.xlu0 %v1392
        %v1648 = vpop.xlane.xlu0 %1647
        %1649 = vadd.xlane.f32.xlu0 %v1394
        %v1650 = vpop.xlane.xlu0 %1649
        %1651 = vadd.xlane.f32.xlu0 %v1396
        %v1652 = vpop.xlane.xlu0 %1651
        %1653 = vadd.xlane.f32.xlu0 %v1398
        %v1654 = vpop.xlane.xlu0 %1653
        %1655 = vadd.xlane.f32.xlu0 %v1400
        %v1656 = vpop.xlane.xlu0 %1655
        %1657 = vadd.xlane.f32.xlu0 %v1402
        %v1658 = vpop.xlane.xlu0 %1657
        %1659 = vadd.xlane.f32.xlu0 %v1404
        %v1660 = vpop.xlane.xlu0 %1659
        %1661 = vadd.xlane.f32.xlu0 %v1406
        %v1662 = vpop.xlane.xlu0 %1661
        %1663 = vadd.xlane.f32.xlu0 %v1408
        %v1664 = vpop.xlane.xlu0 %1663
        %1665 = vadd.xlane.f32.xlu0 %v1410
        %v1666 = vpop.xlane.xlu0 %1665
        %1667 = vadd.xlane.f32.xlu0 %v1412
        %v1668 = vpop.xlane.xlu0 %1667
        %1669 = vadd.xlane.f32.xlu0 %v1414
        %v1670 = vpop.xlane.xlu0 %1669
        %1671 = vadd.xlane.f32.xlu0 %v1416
        %v1672 = vpop.xlane.xlu0 %1671
        %1673 = vadd.xlane.f32.xlu0 %v1418
        %v1674 = vpop.xlane.xlu0 %1673
        %1675 = vadd.xlane.f32.xlu0 %v1420
        %v1676 = vpop.xlane.xlu0 %1675
        %1677 = vadd.xlane.f32.xlu0 %v1422
        %v1678 = vpop.xlane.xlu0 %1677
        %1679 = vadd.xlane.f32.xlu0 %v1424
        %v1680 = vpop.xlane.xlu0 %1679
        %1681 = vadd.xlane.f32.xlu0 %v1426
        %v1682 = vpop.xlane.xlu0 %1681
        %1683 = vadd.xlane.f32.xlu0 %v1428
        %v1684 = vpop.xlane.xlu0 %1683
        %1685 = vadd.xlane.f32.xlu0 %v1430
        %v1686 = vpop.xlane.xlu0 %1685
        %1687 = vadd.xlane.f32.xlu0 %v1432
        %v1688 = vpop.xlane.xlu0 %1687
        %1689 = vadd.xlane.f32.xlu0 %v1434
        %v1690 = vpop.xlane.xlu0 %1689
        %1691 = vadd.xlane.f32.xlu0 %v1436
        %v1692 = vpop.xlane.xlu0 %1691
        %1693 = vadd.xlane.f32.xlu0 %v1438
        %v1694 = vpop.xlane.xlu0 %1693
        %1695 = vadd.xlane.f32.xlu0 %v1440
        %v1696 = vpop.xlane.xlu0 %1695
        %1697 = vadd.xlane.f32.xlu0 %v1442
        %v1698 = vpop.xlane.xlu0 %1697
        %1699 = vadd.xlane.f32.xlu0 %v1444
        %v1700 = vpop.xlane.xlu0 %1699
        %1701 = vadd.xlane.f32.xlu0 %v1446
        %v1702 = vpop.xlane.xlu0 %1701
        %1703 = vadd.xlane.f32.xlu0 %v1448
        %v1704 = vpop.xlane.xlu0 %1703
        %1705 = vadd.xlane.f32.xlu0 %v1450
        %v1706 = vpop.xlane.xlu0 %1705
        %v1707 = vrcp.pop %v1452
        %v1708 = vrcp.pop %v1454
        %v1709 = vrcp.pop %v1456
        %v1710 = vrcp.pop %v1458
        %v1711 = vrcp.pop %v1460
        %v1712 = vrcp.pop %v1462
        %v1713 = vrcp.pop %v1464
        %v1714 = vrcp.pop %v1466
        %v1715 = vrcp.pop %v1468
        %v1716 = vrcp.pop %v1470
        %v1717 = vrcp.pop %v1472
        %v1718 = vrcp.pop %v1474
        %v1719 = vrcp.pop %v1476
        %v1720 = vrcp.pop %v1478
        %v1721 = vrcp.pop %v1480
        %v1722 = vrcp.pop %v1482
        %v1723 = vrcp.pop %v1484
        %v1724 = vrcp.pop %v1486
        %v1725 = vrcp.pop %v1488
        %v1726 = vrcp.pop %v1490
        %v1727 = vrcp.pop %v1492
        %v1728 = vrcp.pop %v1494
        %v1729 = vrcp.pop %v1496
        %v1730 = vrcp.pop %v1498
        %v1731 = vrcp.pop %v1500
        %v1732 = vrcp.pop %v1502
        %v1733 = vrcp.pop %v1504
        %v1734 = vrcp.pop %v1506
        %v1735 = vrcp.pop %v1508
        %v1736 = vrcp.pop %v1510
        %v1737 = vrcp.pop %v1512
        %v1738 = vrcp.pop %v1514
        %v1739 = vrcp.pop %v1516
        %v1740 = vrcp.pop %v1518
        %v1741 = vrcp.pop %v1520
        %v1742 = vrcp.pop %v1522
        %v1743 = vrcp.pop %v1524
        %v1744 = vrcp.pop %v1526
        %v1745 = vrcp.pop %v1528
        %v1746 = vrcp.pop %v1530
        %v1747 = vrcp.pop %v1532
        %v1748 = vrcp.pop %v1534
        %v1749 = vrcp.pop %v1536
        %v1750 = vrcp.pop %v1538
        %v1751 = vrcp.pop %v1540
        %v1752 = vrcp.pop %v1542
        %v1753 = vrcp.pop %v1544
        %v1754 = vrcp.pop %v1546
        %v1755 = vrcp.pop %v1548
        %v1756 = vrcp.pop %v1550
        %v1757 = vrcp.pop %v1552
        %v1758 = vrcp.pop %v1554
        %v1759 = vrcp.pop %v1556
        %v1760 = vrcp.pop %v1558
        %v1761 = vrcp.pop %v1560
        %v1762 = vrcp.pop %v1562
        %v1763 = vrcp.pop %v1564
        %v1764 = vrcp.pop %v1566
        %v1765 = vrcp.pop %v1568
        %v1766 = vrcp.pop %v1570
        %v1767 = vrcp.pop %v1572
        %v1768 = vrcp.pop %v1574
        %v1769 = vrcp.pop %v1576
        %v1770 = vrcp.pop %v1578
        %v1771 = vrcp.pop %v1580
        %v1772 = vrcp.pop %v1582
        %v1773 = vrcp.pop %v1584
        %v1774 = vrcp.pop %v1586
        %v1775 = vrcp.pop %v1588
        %v1776 = vrcp.pop %v1590
        %v1777 = vrcp.pop %v1592
        %v1778 = vrcp.pop %v1594
        %v1779 = vrcp.pop %v1596
        %v1780 = vrcp.pop %v1598
        %v1781 = vrcp.pop %v1600
        %v1782 = vrcp.pop %v1602
        %v1783 = vrcp.pop %v1604
        %v1784 = vrcp.pop %v1606
        %v1785 = vrcp.pop %v1608
        %v1786 = vrcp.pop %v1610
        %v1787 = vrcp.pop %v1612
        %v1788 = vrcp.pop %v1614
        %v1789 = vrcp.pop %v1616
        %v1790 = vrcp.pop %v1618
        %v1791 = vrcp.pop %v1620
        %v1792 = vrcp.pop %v1622
        %v1793 = vrcp.pop %v1624
        %v1794 = vrcp.pop %v1626
        %v1795 = vrcp.pop %v1628
        %v1796 = vrcp.pop %v1630
        %v1797 = vrcp.pop %v1632
        %v1798 = vrcp.pop %v1634
        %v1799 = vrcp.pop %v1636
        %v1800 = vrcp.pop %v1638
        %v1801 = vrcp.pop %v1640
        %v1802 = vrcp.pop %v1642
        %v1803 = vrcp.pop %v1644
        %v1804 = vrcp.pop %v1646
        %v1805 = vrcp.pop %v1648
        %v1806 = vrcp.pop %v1650
        %v1807 = vrcp.pop %v1652
        %v1808 = vrcp.pop %v1654
        %v1809 = vrcp.pop %v1656
        %v1810 = vrcp.pop %v1658
        %v1811 = vrcp.pop %v1660
        %v1812 = vrcp.pop %v1662
        %v1813 = vrcp.pop %v1664
        %v1814 = vrcp.pop %v1666
        %v1815 = vrcp.pop %v1668
        %v1816 = vrcp.pop %v1670
        %v1817 = vrcp.pop %v1672
        %v1818 = vrcp.pop %v1674
        %v1819 = vrcp.pop %v1676
        %v1820 = vrcp.pop %v1678
        %v1821 = vrcp.pop %v1680
        %v1822 = vrcp.pop %v1682
        %v1823 = vrcp.pop %v1684
        %v1824 = vrcp.pop %v1686
        %v1825 = vrcp.pop %v1688
        %v1826 = vrcp.pop %v1690
        %v1827 = vrcp.pop %v1692
        %v1828 = vrcp.pop %v1694
        %v1829 = vrcp.pop %v1696
        %v1830 = vrcp.pop %v1698
        %v1831 = vrcp.pop %v1700
        %v1832 = vrcp.pop %v1702
        %v1833 = vrcp.pop %v1704
        %v1834 = vrcp.pop %v1706
        %v1835 = vmul.f32 %v1196, %v1707
        %v1836 = vmul.f32 %v1198, %v1708
        %v1837 = vmul.f32 %v1200, %v1709
        %v1838 = vmul.f32 %v1202, %v1710
        %v1839 = vmul.f32 %v1204, %v1711
        %v1840 = vmul.f32 %v1206, %v1712
        %v1841 = vmul.f32 %v1208, %v1713
        %v1842 = vmul.f32 %v1210, %v1714
        %v1843 = vmul.f32 %v1212, %v1715
        %v1844 = vmul.f32 %v1214, %v1716
        %v1845 = vmul.f32 %v1216, %v1717
        %v1846 = vmul.f32 %v1218, %v1718
        %v1847 = vmul.f32 %v1220, %v1719
        %v1848 = vmul.f32 %v1222, %v1720
        %v1849 = vmul.f32 %v1224, %v1721
        %v1850 = vmul.f32 %v1226, %v1722
        %v1851 = vmul.f32 %v1228, %v1723
        %v1852 = vmul.f32 %v1230, %v1724
        %v1853 = vmul.f32 %v1232, %v1725
        %v1854 = vmul.f32 %v1234, %v1726
        %v1855 = vmul.f32 %v1236, %v1727
        %v1856 = vmul.f32 %v1238, %v1728
        %v1857 = vmul.f32 %v1240, %v1729
        %v1858 = vmul.f32 %v1242, %v1730
        %v1859 = vmul.f32 %v1244, %v1731
        %v1860 = vmul.f32 %v1246, %v1732
        %v1861 = vmul.f32 %v1248, %v1733
        %v1862 = vmul.f32 %v1250, %v1734
        %v1863 = vmul.f32 %v1252, %v1735
        %v1864 = vmul.f32 %v1254, %v1736
        %v1865 = vmul.f32 %v1256, %v1737
        %v1866 = vmul.f32 %v1258, %v1738
        %v1867 = vmul.f32 %v1260, %v1739
        %v1868 = vmul.f32 %v1262, %v1740
        %v1869 = vmul.f32 %v1264, %v1741
        %v1870 = vmul.f32 %v1266, %v1742
        %v1871 = vmul.f32 %v1268, %v1743
        %v1872 = vmul.f32 %v1270, %v1744
        %v1873 = vmul.f32 %v1272, %v1745
        %v1874 = vmul.f32 %v1274, %v1746
        %v1875 = vmul.f32 %v1276, %v1747
        %v1876 = vmul.f32 %v1278, %v1748
        %v1877 = vmul.f32 %v1280, %v1749
        %v1878 = vmul.f32 %v1282, %v1750
        %v1879 = vmul.f32 %v1284, %v1751
        %v1880 = vmul.f32 %v1286, %v1752
        %v1881 = vmul.f32 %v1288, %v1753
        %v1882 = vmul.f32 %v1290, %v1754
        %v1883 = vmul.f32 %v1292, %v1755
        %v1884 = vmul.f32 %v1294, %v1756
        %v1885 = vmul.f32 %v1296, %v1757
        %v1886 = vmul.f32 %v1298, %v1758
        %v1887 = vmul.f32 %v1300, %v1759
        %v1888 = vmul.f32 %v1302, %v1760
        %v1889 = vmul.f32 %v1304, %v1761
        %v1890 = vmul.f32 %v1306, %v1762
        %v1891 = vmul.f32 %v1308, %v1763
        %v1892 = vmul.f32 %v1310, %v1764
        %v1893 = vmul.f32 %v1312, %v1765
        %v1894 = vmul.f32 %v1314, %v1766
        %v1895 = vmul.f32 %v1316, %v1767
        %v1896 = vmul.f32 %v1318, %v1768
        %v1897 = vmul.f32 %v1320, %v1769
        %v1898 = vmul.f32 %v1322, %v1770
        %v1899 = vmul.f32 %v1324, %v1771
        %v1900 = vmul.f32 %v1326, %v1772
        %v1901 = vmul.f32 %v1328, %v1773
        %v1902 = vmul.f32 %v1330, %v1774
        %v1903 = vmul.f32 %v1332, %v1775
        %v1904 = vmul.f32 %v1334, %v1776
        %v1905 = vmul.f32 %v1336, %v1777
        %v1906 = vmul.f32 %v1338, %v1778
        %v1907 = vmul.f32 %v1340, %v1779
        %v1908 = vmul.f32 %v1342, %v1780
        %v1909 = vmul.f32 %v1344, %v1781
        %v1910 = vmul.f32 %v1346, %v1782
        %v1911 = vmul.f32 %v1348, %v1783
        %v1912 = vmul.f32 %v1350, %v1784
        %v1913 = vmul.f32 %v1352, %v1785
        %v1914 = vmul.f32 %v1354, %v1786
        %v1915 = vmul.f32 %v1356, %v1787
        %v1916 = vmul.f32 %v1358, %v1788
        %v1917 = vmul.f32 %v1360, %v1789
        %v1918 = vmul.f32 %v1362, %v1790
        %v1919 = vmul.f32 %v1364, %v1791
        %v1920 = vmul.f32 %v1366, %v1792
        %v1921 = vmul.f32 %v1368, %v1793
        %v1922 = vmul.f32 %v1370, %v1794
        %v1923 = vmul.f32 %v1372, %v1795
        %v1924 = vmul.f32 %v1374, %v1796
        %v1925 = vmul.f32 %v1376, %v1797
        %v1926 = vmul.f32 %v1378, %v1798
        %v1927 = vmul.f32 %v1380, %v1799
        %v1928 = vmul.f32 %v1382, %v1800
        %v1929 = vmul.f32 %v1384, %v1801
        %v1930 = vmul.f32 %v1386, %v1802
        %v1931 = vmul.f32 %v1388, %v1803
        %v1932 = vmul.f32 %v1390, %v1804
        %v1933 = vmul.f32 %v1392, %v1805
        %v1934 = vmul.f32 %v1394, %v1806
        %v1935 = vmul.f32 %v1396, %v1807
        %v1936 = vmul.f32 %v1398, %v1808
        %v1937 = vmul.f32 %v1400, %v1809
        %v1938 = vmul.f32 %v1402, %v1810
        %v1939 = vmul.f32 %v1404, %v1811
        %v1940 = vmul.f32 %v1406, %v1812
        %v1941 = vmul.f32 %v1408, %v1813
        %v1942 = vmul.f32 %v1410, %v1814
        %v1943 = vmul.f32 %v1412, %v1815
        %v1944 = vmul.f32 %v1414, %v1816
        %v1945 = vmul.f32 %v1416, %v1817
        %v1946 = vmul.f32 %v1418, %v1818
        %v1947 = vmul.f32 %v1420, %v1819
        %v1948 = vmul.f32 %v1422, %v1820
        %v1949 = vmul.f32 %v1424, %v1821
        %v1950 = vmul.f32 %v1426, %v1822
        %v1951 = vmul.f32 %v1428, %v1823
        %v1952 = vmul.f32 %v1430, %v1824
        %v1953 = vmul.f32 %v1432, %v1825
        %v1954 = vmul.f32 %v1434, %v1826
        %v1955 = vmul.f32 %v1436, %v1827
        %v1956 = vmul.f32 %v1438, %v1828
        %v1957 = vmul.f32 %v1440, %v1829
        %v1958 = vmul.f32 %v1442, %v1830
        %v1959 = vmul.f32 %v1444, %v1831
        %v1960 = vmul.f32 %v1446, %v1832
        %v1961 = vmul.f32 %v1448, %v1833
        %v1962 = vmul.f32 %v1450, %v1834
        %v1963 = vpack.c.bf16 %v1836, %v1835
        %v1964 = vpack.c.bf16 %v1838, %v1837
        %v1965 = vpack.c.bf16 %v1840, %v1839
        %v1966 = vpack.c.bf16 %v1842, %v1841
        %v1967 = vpack.c.bf16 %v1844, %v1843
        %v1968 = vpack.c.bf16 %v1846, %v1845
        %v1969 = vpack.c.bf16 %v1848, %v1847
        %v1970 = vpack.c.bf16 %v1850, %v1849
        %v1971 = vpack.c.bf16 %v1852, %v1851
        %v1972 = vpack.c.bf16 %v1854, %v1853
        %v1973 = vpack.c.bf16 %v1856, %v1855
        %v1974 = vpack.c.bf16 %v1858, %v1857
        %v1975 = vpack.c.bf16 %v1860, %v1859
        %v1976 = vpack.c.bf16 %v1862, %v1861
        %v1977 = vpack.c.bf16 %v1864, %v1863
        %v1978 = vpack.c.bf16 %v1866, %v1865
        %v1979 = vpack.c.bf16 %v1868, %v1867
        %v1980 = vpack.c.bf16 %v1870, %v1869
        %v1981 = vpack.c.bf16 %v1872, %v1871
        %v1982 = vpack.c.bf16 %v1874, %v1873
        %v1983 = vpack.c.bf16 %v1876, %v1875
        %v1984 = vpack.c.bf16 %v1878, %v1877
        %v1985 = vpack.c.bf16 %v1880, %v1879
        %v1986 = vpack.c.bf16 %v1882, %v1881
        %v1987 = vpack.c.bf16 %v1884, %v1883
        %v1988 = vpack.c.bf16 %v1886, %v1885
        %v1989 = vpack.c.bf16 %v1888, %v1887
        %v1990 = vpack.c.bf16 %v1890, %v1889
        %v1991 = vpack.c.bf16 %v1892, %v1891
        %v1992 = vpack.c.bf16 %v1894, %v1893
        %v1993 = vpack.c.bf16 %v1896, %v1895
        %v1994 = vpack.c.bf16 %v1898, %v1897
        %v1995 = vpack.c.bf16 %v1900, %v1899
        %v1996 = vpack.c.bf16 %v1902, %v1901
        %v1997 = vpack.c.bf16 %v1904, %v1903
        %v1998 = vpack.c.bf16 %v1906, %v1905
        %v1999 = vpack.c.bf16 %v1908, %v1907
        %v2000 = vpack.c.bf16 %v1910, %v1909
        %v2001 = vpack.c.bf16 %v1912, %v1911
        %v2002 = vpack.c.bf16 %v1914, %v1913
        %v2003 = vpack.c.bf16 %v1916, %v1915
        %v2004 = vpack.c.bf16 %v1918, %v1917
        %v2005 = vpack.c.bf16 %v1920, %v1919
        %v2006 = vpack.c.bf16 %v1922, %v1921
        %v2007 = vpack.c.bf16 %v1924, %v1923
        %v2008 = vpack.c.bf16 %v1926, %v1925
        %v2009 = vpack.c.bf16 %v1928, %v1927
        %v2010 = vpack.c.bf16 %v1930, %v1929
        %v2011 = vpack.c.bf16 %v1932, %v1931
        %v2012 = vpack.c.bf16 %v1934, %v1933
        %v2013 = vpack.c.bf16 %v1936, %v1935
        %v2014 = vpack.c.bf16 %v1938, %v1937
        %v2015 = vpack.c.bf16 %v1940, %v1939
        %v2016 = vpack.c.bf16 %v1942, %v1941
        %v2017 = vpack.c.bf16 %v1944, %v1943
        %v2018 = vpack.c.bf16 %v1946, %v1945
        %v2019 = vpack.c.bf16 %v1948, %v1947
        %v2020 = vpack.c.bf16 %v1950, %v1949
        %v2021 = vpack.c.bf16 %v1952, %v1951
        %v2022 = vpack.c.bf16 %v1954, %v1953
        %v2023 = vpack.c.bf16 %v1956, %v1955
        %v2024 = vpack.c.bf16 %v1958, %v1957
        %v2025 = vpack.c.bf16 %v1960, %v1959
        %v2026 = vpack.c.bf16 %v1962, %v1961
        %v2027 = vld [vmem:[#allocation7] sm:$0xf]
        %v2028 = vld [vmem:[#allocation7 + $0x4] sm:$0xf]
        %v2029 = vld [vmem:[#allocation7 + $0x8] sm:$0xf]
        %v2030 = vld [vmem:[#allocation7 + $0xc] sm:$0xf]
        %v2031 = vld [vmem:[#allocation7 + $0x10] sm:$0xf]
        %v2032 = vld [vmem:[#allocation7 + $0x14] sm:$0xf]
        %v2033 = vld [vmem:[#allocation7 + $0x18] sm:$0xf]
        %v2034 = vld [vmem:[#allocation7 + $0x1c] sm:$0xf]
        %v2035 = vld [vmem:[#allocation7 + $0x20] sm:$0xf]
        %v2036 = vld [vmem:[#allocation7 + $0x24] sm:$0xf]
        %v2037 = vld [vmem:[#allocation7 + $0x28] sm:$0xf]
        %v2038 = vld [vmem:[#allocation7 + $0x2c] sm:$0xf]
        %v2039 = vld [vmem:[#allocation7 + $0x30] sm:$0xf]
        %v2040 = vld [vmem:[#allocation7 + $0x34] sm:$0xf]
        %v2041 = vld [vmem:[#allocation7 + $0x38] sm:$0xf]
        %v2042 = vld [vmem:[#allocation7 + $0x3c] sm:$0xf]
        %v2059 = vunpack.c.l.b16 %v2027
        %v2060 = vunpack.c.l.b16 %v2028
        %v2061 = vunpack.c.l.b16 %v2029
        %v2062 = vunpack.c.l.b16 %v2030
        %v2063 = vunpack.c.l.b16 %v2031
        %v2064 = vunpack.c.l.b16 %v2032
        %v2065 = vunpack.c.l.b16 %v2033
        %v2066 = vunpack.c.l.b16 %v2034
        %v2067 = vunpack.c.l.b16 %v2035
        %v2068 = vunpack.c.l.b16 %v2036
        %v2069 = vunpack.c.l.b16 %v2037
        %v2070 = vunpack.c.l.b16 %v2038
        %v2071 = vunpack.c.l.b16 %v2039
        %v2072 = vunpack.c.l.b16 %v2040
        %v2073 = vunpack.c.l.b16 %v2041
        %v2074 = vunpack.c.l.b16 %v2042
        %v2075 = vpack.c.b16 %v2060, %v2059
        %v2076 = vpack.c.b16 %v2062, %v2061
        %v2077 = vpack.c.b16 %v2064, %v2063
        %v2078 = vpack.c.b16 %v2066, %v2065
        %v2079 = vpack.c.b16 %v2068, %v2067
        %v2080 = vpack.c.b16 %v2070, %v2069
        %v2081 = vpack.c.b16 %v2072, %v2071
        %v2082 = vpack.c.b16 %v2074, %v2073
        %2091 = vmatpush.bf16.msra.mxu0 %v2082
        %2092 = vmatpush.bf16.msra.mxu0 %v2081
        %2093 = vmatpush.bf16.msra.mxu0 %v2080
        %2094 = vmatpush.bf16.msra.mxu0 %v2079
        %2095 = vmatpush.bf16.msra.mxu0 %v2078
        %2096 = vmatpush.bf16.msra.mxu0 %v2077
        %2097 = vmatpush.bf16.msra.mxu0 %v2076
        %2098 = vmatpush.bf16.msra.mxu0 %v2075
        %2099 = vmatmul.bf16.gmra.mxu0 %v1963
        %v2100 = vpop.f32.mrf.mxu0
        %v2101 = vadd.f32 0.0, %v2100
        %v2102 = vpop.f32.mrf.mxu0
        %v2103 = vadd.f32 0.0, %v2102
        %2104 = vmatmul.bf16.gmra.mxu0 %v1964
        %v2105 = vpop.f32.mrf.mxu0
        %v2106 = vadd.f32 0.0, %v2105
        %v2107 = vpop.f32.mrf.mxu0
        %v2108 = vadd.f32 0.0, %v2107
        %2109 = vmatmul.bf16.gmra.mxu0 %v1965
        %v2110 = vpop.f32.mrf.mxu0
        %v2111 = vadd.f32 0.0, %v2110
        %v2112 = vpop.f32.mrf.mxu0
        %v2113 = vadd.f32 0.0, %v2112
        %2114 = vmatmul.bf16.gmra.mxu0 %v1966
        %v2115 = vpop.f32.mrf.mxu0
        %v2116 = vadd.f32 0.0, %v2115
        %v2117 = vpop.f32.mrf.mxu0
        %v2118 = vadd.f32 0.0, %v2117
        %2119 = vmatmul.bf16.gmra.mxu0 %v1967
        %v2120 = vpop.f32.mrf.mxu0
        %v2121 = vadd.f32 0.0, %v2120
        %v2122 = vpop.f32.mrf.mxu0
        %v2123 = vadd.f32 0.0, %v2122
        %2124 = vmatmul.bf16.gmra.mxu0 %v1968
        %v2125 = vpop.f32.mrf.mxu0
        %v2126 = vadd.f32 0.0, %v2125
        %v2127 = vpop.f32.mrf.mxu0
        %v2128 = vadd.f32 0.0, %v2127
        %2129 = vmatmul.bf16.gmra.mxu0 %v1969
        %v2130 = vpop.f32.mrf.mxu0
        %v2131 = vadd.f32 0.0, %v2130
        %v2132 = vpop.f32.mrf.mxu0
        %v2133 = vadd.f32 0.0, %v2132
        %2134 = vmatmul.bf16.gmra.mxu0 %v1970
        %v2135 = vpop.f32.mrf.mxu0
        %v2136 = vadd.f32 0.0, %v2135
        %v2137 = vpop.f32.mrf.mxu0
        %v2138 = vadd.f32 0.0, %v2137
        %2139 = vmatmul.bf16.gmra.mxu0 %v1971
        %v2140 = vpop.f32.mrf.mxu0
        %v2141 = vadd.f32 0.0, %v2140
        %v2142 = vpop.f32.mrf.mxu0
        %v2143 = vadd.f32 0.0, %v2142
        %2144 = vmatmul.bf16.gmra.mxu0 %v1972
        %v2145 = vpop.f32.mrf.mxu0
        %v2146 = vadd.f32 0.0, %v2145
        %v2147 = vpop.f32.mrf.mxu0
        %v2148 = vadd.f32 0.0, %v2147
        %2149 = vmatmul.bf16.gmra.mxu0 %v1973
        %v2150 = vpop.f32.mrf.mxu0
        %v2151 = vadd.f32 0.0, %v2150
        %v2152 = vpop.f32.mrf.mxu0
        %v2153 = vadd.f32 0.0, %v2152
        %2154 = vmatmul.bf16.gmra.mxu0 %v1974
        %v2155 = vpop.f32.mrf.mxu0
        %v2156 = vadd.f32 0.0, %v2155
        %v2157 = vpop.f32.mrf.mxu0
        %v2158 = vadd.f32 0.0, %v2157
        %2159 = vmatmul.bf16.gmra.mxu0 %v1975
        %v2160 = vpop.f32.mrf.mxu0
        %v2161 = vadd.f32 0.0, %v2160
        %v2162 = vpop.f32.mrf.mxu0
        %v2163 = vadd.f32 0.0, %v2162
        %2164 = vmatmul.bf16.gmra.mxu0 %v1976
        %v2165 = vpop.f32.mrf.mxu0
        %v2166 = vadd.f32 0.0, %v2165
        %v2167 = vpop.f32.mrf.mxu0
        %v2168 = vadd.f32 0.0, %v2167
        %2169 = vmatmul.bf16.gmra.mxu0 %v1977
        %v2170 = vpop.f32.mrf.mxu0
        %v2171 = vadd.f32 0.0, %v2170
        %v2172 = vpop.f32.mrf.mxu0
        %v2173 = vadd.f32 0.0, %v2172
        %2174 = vmatmul.bf16.gmra.mxu0 %v1978
        %v2175 = vpop.f32.mrf.mxu0
        %v2176 = vadd.f32 0.0, %v2175
        %v2177 = vpop.f32.mrf.mxu0
        %v2178 = vadd.f32 0.0, %v2177
        %2179 = vmatmul.bf16.gmra.mxu0 %v1979
        %v2180 = vpop.f32.mrf.mxu0
        %v2181 = vadd.f32 0.0, %v2180
        %v2182 = vpop.f32.mrf.mxu0
        %v2183 = vadd.f32 0.0, %v2182
        %2184 = vmatmul.bf16.gmra.mxu0 %v1980
        %v2185 = vpop.f32.mrf.mxu0
        %v2186 = vadd.f32 0.0, %v2185
        %v2187 = vpop.f32.mrf.mxu0
        %v2188 = vadd.f32 0.0, %v2187
        %2189 = vmatmul.bf16.gmra.mxu0 %v1981
        %v2190 = vpop.f32.mrf.mxu0
        %v2191 = vadd.f32 0.0, %v2190
        %v2192 = vpop.f32.mrf.mxu0
        %v2193 = vadd.f32 0.0, %v2192
        %2194 = vmatmul.bf16.gmra.mxu0 %v1982
        %v2195 = vpop.f32.mrf.mxu0
        %v2196 = vadd.f32 0.0, %v2195
        %v2197 = vpop.f32.mrf.mxu0
        %v2198 = vadd.f32 0.0, %v2197
        %2199 = vmatmul.bf16.gmra.mxu0 %v1983
        %v2200 = vpop.f32.mrf.mxu0
        %v2201 = vadd.f32 0.0, %v2200
        %v2202 = vpop.f32.mrf.mxu0
        %v2203 = vadd.f32 0.0, %v2202
        %2204 = vmatmul.bf16.gmra.mxu0 %v1984
        %v2205 = vpop.f32.mrf.mxu0
        %v2206 = vadd.f32 0.0, %v2205
        %v2207 = vpop.f32.mrf.mxu0
        %v2208 = vadd.f32 0.0, %v2207
        %2209 = vmatmul.bf16.gmra.mxu0 %v1985
        %v2210 = vpop.f32.mrf.mxu0
        %v2211 = vadd.f32 0.0, %v2210
        %v2212 = vpop.f32.mrf.mxu0
        %v2213 = vadd.f32 0.0, %v2212
        %2214 = vmatmul.bf16.gmra.mxu0 %v1986
        %v2215 = vpop.f32.mrf.mxu0
        %v2216 = vadd.f32 0.0, %v2215
        %v2217 = vpop.f32.mrf.mxu0
        %v2218 = vadd.f32 0.0, %v2217
        %2219 = vmatmul.bf16.gmra.mxu0 %v1987
        %v2220 = vpop.f32.mrf.mxu0
        %v2221 = vadd.f32 0.0, %v2220
        %v2222 = vpop.f32.mrf.mxu0
        %v2223 = vadd.f32 0.0, %v2222
        %2224 = vmatmul.bf16.gmra.mxu0 %v1988
        %v2225 = vpop.f32.mrf.mxu0
        %v2226 = vadd.f32 0.0, %v2225
        %v2227 = vpop.f32.mrf.mxu0
        %v2228 = vadd.f32 0.0, %v2227
        %2229 = vmatmul.bf16.gmra.mxu0 %v1989
        %v2230 = vpop.f32.mrf.mxu0
        %v2231 = vadd.f32 0.0, %v2230
        %v2232 = vpop.f32.mrf.mxu0
        %v2233 = vadd.f32 0.0, %v2232
        %2234 = vmatmul.bf16.gmra.mxu0 %v1990
        %v2235 = vpop.f32.mrf.mxu0
        %v2236 = vadd.f32 0.0, %v2235
        %v2237 = vpop.f32.mrf.mxu0
        %v2238 = vadd.f32 0.0, %v2237
        %2239 = vmatmul.bf16.gmra.mxu0 %v1991
        %v2240 = vpop.f32.mrf.mxu0
        %v2241 = vadd.f32 0.0, %v2240
        %v2242 = vpop.f32.mrf.mxu0
        %v2243 = vadd.f32 0.0, %v2242
        %2244 = vmatmul.bf16.gmra.mxu0 %v1992
        %v2245 = vpop.f32.mrf.mxu0
        %v2246 = vadd.f32 0.0, %v2245
        %v2247 = vpop.f32.mrf.mxu0
        %v2248 = vadd.f32 0.0, %v2247
        %2249 = vmatmul.bf16.gmra.mxu0 %v1993
        %v2250 = vpop.f32.mrf.mxu0
        %v2251 = vadd.f32 0.0, %v2250
        %v2252 = vpop.f32.mrf.mxu0
        %v2253 = vadd.f32 0.0, %v2252
        %2254 = vmatmul.bf16.gmra.mxu0 %v1994
        %v2255 = vpop.f32.mrf.mxu0
        %v2256 = vadd.f32 0.0, %v2255
        %v2257 = vpop.f32.mrf.mxu0
        %v2258 = vadd.f32 0.0, %v2257
        %2259 = vmatmul.bf16.gmra.mxu0 %v1995
        %v2260 = vpop.f32.mrf.mxu0
        %v2261 = vadd.f32 0.0, %v2260
        %v2262 = vpop.f32.mrf.mxu0
        %v2263 = vadd.f32 0.0, %v2262
        %2264 = vmatmul.bf16.gmra.mxu0 %v1996
        %v2265 = vpop.f32.mrf.mxu0
        %v2266 = vadd.f32 0.0, %v2265
        %v2267 = vpop.f32.mrf.mxu0
        %v2268 = vadd.f32 0.0, %v2267
        %2269 = vmatmul.bf16.gmra.mxu0 %v1997
        %v2270 = vpop.f32.mrf.mxu0
        %v2271 = vadd.f32 0.0, %v2270
        %v2272 = vpop.f32.mrf.mxu0
        %v2273 = vadd.f32 0.0, %v2272
        %2274 = vmatmul.bf16.gmra.mxu0 %v1998
        %v2275 = vpop.f32.mrf.mxu0
        %v2276 = vadd.f32 0.0, %v2275
        %v2277 = vpop.f32.mrf.mxu0
        %v2278 = vadd.f32 0.0, %v2277
        %2279 = vmatmul.bf16.gmra.mxu0 %v1999
        %v2280 = vpop.f32.mrf.mxu0
        %v2281 = vadd.f32 0.0, %v2280
        %v2282 = vpop.f32.mrf.mxu0
        %v2283 = vadd.f32 0.0, %v2282
        %2284 = vmatmul.bf16.gmra.mxu0 %v2000
        %v2285 = vpop.f32.mrf.mxu0
        %v2286 = vadd.f32 0.0, %v2285
        %v2287 = vpop.f32.mrf.mxu0
        %v2288 = vadd.f32 0.0, %v2287
        %2289 = vmatmul.bf16.gmra.mxu0 %v2001
        %v2290 = vpop.f32.mrf.mxu0
        %v2291 = vadd.f32 0.0, %v2290
        %v2292 = vpop.f32.mrf.mxu0
        %v2293 = vadd.f32 0.0, %v2292
        %2294 = vmatmul.bf16.gmra.mxu0 %v2002
        %v2295 = vpop.f32.mrf.mxu0
        %v2296 = vadd.f32 0.0, %v2295
        %v2297 = vpop.f32.mrf.mxu0
        %v2298 = vadd.f32 0.0, %v2297
        %2299 = vmatmul.bf16.gmra.mxu0 %v2003
        %v2300 = vpop.f32.mrf.mxu0
        %v2301 = vadd.f32 0.0, %v2300
        %v2302 = vpop.f32.mrf.mxu0
        %v2303 = vadd.f32 0.0, %v2302
        %2304 = vmatmul.bf16.gmra.mxu0 %v2004
        %v2305 = vpop.f32.mrf.mxu0
        %v2306 = vadd.f32 0.0, %v2305
        %v2307 = vpop.f32.mrf.mxu0
        %v2308 = vadd.f32 0.0, %v2307
        %2309 = vmatmul.bf16.gmra.mxu0 %v2005
        %v2310 = vpop.f32.mrf.mxu0
        %v2311 = vadd.f32 0.0, %v2310
        %v2312 = vpop.f32.mrf.mxu0
        %v2313 = vadd.f32 0.0, %v2312
        %2314 = vmatmul.bf16.gmra.mxu0 %v2006
        %v2315 = vpop.f32.mrf.mxu0
        %v2316 = vadd.f32 0.0, %v2315
        %v2317 = vpop.f32.mrf.mxu0
        %v2318 = vadd.f32 0.0, %v2317
        %2319 = vmatmul.bf16.gmra.mxu0 %v2007
        %v2320 = vpop.f32.mrf.mxu0
        %v2321 = vadd.f32 0.0, %v2320
        %v2322 = vpop.f32.mrf.mxu0
        %v2323 = vadd.f32 0.0, %v2322
        %2324 = vmatmul.bf16.gmra.mxu0 %v2008
        %v2325 = vpop.f32.mrf.mxu0
        %v2326 = vadd.f32 0.0, %v2325
        %v2327 = vpop.f32.mrf.mxu0
        %v2328 = vadd.f32 0.0, %v2327
        %2329 = vmatmul.bf16.gmra.mxu0 %v2009
        %v2330 = vpop.f32.mrf.mxu0
        %v2331 = vadd.f32 0.0, %v2330
        %v2332 = vpop.f32.mrf.mxu0
        %v2333 = vadd.f32 0.0, %v2332
        %2334 = vmatmul.bf16.gmra.mxu0 %v2010
        %v2335 = vpop.f32.mrf.mxu0
        %v2336 = vadd.f32 0.0, %v2335
        %v2337 = vpop.f32.mrf.mxu0
        %v2338 = vadd.f32 0.0, %v2337
        %2339 = vmatmul.bf16.gmra.mxu0 %v2011
        %v2340 = vpop.f32.mrf.mxu0
        %v2341 = vadd.f32 0.0, %v2340
        %v2342 = vpop.f32.mrf.mxu0
        %v2343 = vadd.f32 0.0, %v2342
        %2344 = vmatmul.bf16.gmra.mxu0 %v2012
        %v2345 = vpop.f32.mrf.mxu0
        %v2346 = vadd.f32 0.0, %v2345
        %v2347 = vpop.f32.mrf.mxu0
        %v2348 = vadd.f32 0.0, %v2347
        %2349 = vmatmul.bf16.gmra.mxu0 %v2013
        %v2350 = vpop.f32.mrf.mxu0
        %v2351 = vadd.f32 0.0, %v2350
        %v2352 = vpop.f32.mrf.mxu0
        %v2353 = vadd.f32 0.0, %v2352
        %2354 = vmatmul.bf16.gmra.mxu0 %v2014
        %v2355 = vpop.f32.mrf.mxu0
        %v2356 = vadd.f32 0.0, %v2355
        %v2357 = vpop.f32.mrf.mxu0
        %v2358 = vadd.f32 0.0, %v2357
        %2359 = vmatmul.bf16.gmra.mxu0 %v2015
        %v2360 = vpop.f32.mrf.mxu0
        %v2361 = vadd.f32 0.0, %v2360
        %v2362 = vpop.f32.mrf.mxu0
        %v2363 = vadd.f32 0.0, %v2362
        %2364 = vmatmul.bf16.gmra.mxu0 %v2016
        %v2365 = vpop.f32.mrf.mxu0
        %v2366 = vadd.f32 0.0, %v2365
        %v2367 = vpop.f32.mrf.mxu0
        %v2368 = vadd.f32 0.0, %v2367
        %2369 = vmatmul.bf16.gmra.mxu0 %v2017
        %v2370 = vpop.f32.mrf.mxu0
        %v2371 = vadd.f32 0.0, %v2370
        %v2372 = vpop.f32.mrf.mxu0
        %v2373 = vadd.f32 0.0, %v2372
        %2374 = vmatmul.bf16.gmra.mxu0 %v2018
        %v2375 = vpop.f32.mrf.mxu0
        %v2376 = vadd.f32 0.0, %v2375
        %v2377 = vpop.f32.mrf.mxu0
        %v2378 = vadd.f32 0.0, %v2377
        %2379 = vmatmul.bf16.gmra.mxu0 %v2019
        %v2380 = vpop.f32.mrf.mxu0
        %v2381 = vadd.f32 0.0, %v2380
        %v2382 = vpop.f32.mrf.mxu0
        %v2383 = vadd.f32 0.0, %v2382
        %2384 = vmatmul.bf16.gmra.mxu0 %v2020
        %v2385 = vpop.f32.mrf.mxu0
        %v2386 = vadd.f32 0.0, %v2385
        %v2387 = vpop.f32.mrf.mxu0
        %v2388 = vadd.f32 0.0, %v2387
        %2389 = vmatmul.bf16.gmra.mxu0 %v2021
        %v2390 = vpop.f32.mrf.mxu0
        %v2391 = vadd.f32 0.0, %v2390
        %v2392 = vpop.f32.mrf.mxu0
        %v2393 = vadd.f32 0.0, %v2392
        %2394 = vmatmul.bf16.gmra.mxu0 %v2022
        %v2395 = vpop.f32.mrf.mxu0
        %v2396 = vadd.f32 0.0, %v2395
        %v2397 = vpop.f32.mrf.mxu0
        %v2398 = vadd.f32 0.0, %v2397
        %2399 = vmatmul.bf16.gmra.mxu0 %v2023
        %v2400 = vpop.f32.mrf.mxu0
        %v2401 = vadd.f32 0.0, %v2400
        %v2402 = vpop.f32.mrf.mxu0
        %v2403 = vadd.f32 0.0, %v2402
        %2404 = vmatmul.bf16.gmra.mxu0 %v2024
        %v2405 = vpop.f32.mrf.mxu0
        %v2406 = vadd.f32 0.0, %v2405
        %v2407 = vpop.f32.mrf.mxu0
        %v2408 = vadd.f32 0.0, %v2407
        %2409 = vmatmul.bf16.gmra.mxu0 %v2025
        %v2410 = vpop.f32.mrf.mxu0
        %v2411 = vadd.f32 0.0, %v2410
        %v2412 = vpop.f32.mrf.mxu0
        %v2413 = vadd.f32 0.0, %v2412
        %2414 = vmatmul.bf16.gmra.mxu0 %v2026
        %v2415 = vpop.f32.mrf.mxu0
        %v2416 = vadd.f32 0.0, %v2415
        %v2417 = vpop.f32.mrf.mxu0
        %v2418 = vadd.f32 0.0, %v2417
        %2419 = vdwg.mxu0
        %2420 = vst [vmem:[%s223] sm:$0xff] %v2101
        %2421 = vst [vmem:[%s223 + $0x8] sm:$0xff] %v2103
        %2422 = vst [vmem:[%s223 + $0x10] sm:$0xff] %v2106
        %2423 = vst [vmem:[%s223 + $0x18] sm:$0xff] %v2108
        %2424 = vst [vmem:[%s223 + $0x20] sm:$0xff] %v2111
        %2425 = vst [vmem:[%s223 + $0x28] sm:$0xff] %v2113
        %2426 = vst [vmem:[%s223 + $0x30] sm:$0xff] %v2116
        %2427 = vst [vmem:[%s223 + $0x38] sm:$0xff] %v2118
        %2428 = vst [vmem:[%s223 + $0x40] sm:$0xff] %v2121
        %2429 = vst [vmem:[%s223 + $0x48] sm:$0xff] %v2123
        %2430 = vst [vmem:[%s223 + $0x50] sm:$0xff] %v2126
        %2431 = vst [vmem:[%s223 + $0x58] sm:$0xff] %v2128
        %2432 = vst [vmem:[%s223 + $0x60] sm:$0xff] %v2131
        %2433 = vst [vmem:[%s223 + $0x68] sm:$0xff] %v2133
        %2434 = vst [vmem:[%s223 + $0x70] sm:$0xff] %v2136
        %2435 = vst [vmem:[%s223 + $0x78] sm:$0xff] %v2138
        %2436 = vst [vmem:[%s223 + $0x80] sm:$0xff] %v2141
        %2437 = vst [vmem:[%s223 + $0x88] sm:$0xff] %v2143
        %2438 = vst [vmem:[%s223 + $0x90] sm:$0xff] %v2146
        %2439 = vst [vmem:[%s223 + $0x98] sm:$0xff] %v2148
        %2440 = vst [vmem:[%s223 + $0xa0] sm:$0xff] %v2151
        %2441 = vst [vmem:[%s223 + $0xa8] sm:$0xff] %v2153
        %2442 = vst [vmem:[%s223 + $0xb0] sm:$0xff] %v2156
        %2443 = vst [vmem:[%s223 + $0xb8] sm:$0xff] %v2158
        %2444 = vst [vmem:[%s223 + $0xc0] sm:$0xff] %v2161
        %2445 = vst [vmem:[%s223 + $0xc8] sm:$0xff] %v2163
        %2446 = vst [vmem:[%s223 + $0xd0] sm:$0xff] %v2166
        %2447 = vst [vmem:[%s223 + $0xd8] sm:$0xff] %v2168
        %2448 = vst [vmem:[%s223 + $0xe0] sm:$0xff] %v2171
        %2449 = vst [vmem:[%s223 + $0xe8] sm:$0xff] %v2173
        %2450 = vst [vmem:[%s223 + $0xf0] sm:$0xff] %v2176
        %2451 = vst [vmem:[%s223 + $0xf8] sm:$0xff] %v2178
        %2452 = vst [vmem:[%s223 + $0x100] sm:$0xff] %v2181
        %2453 = vst [vmem:[%s223 + $0x108] sm:$0xff] %v2183
        %2454 = vst [vmem:[%s223 + $0x110] sm:$0xff] %v2186
        %2455 = vst [vmem:[%s223 + $0x118] sm:$0xff] %v2188
        %2456 = vst [vmem:[%s223 + $0x120] sm:$0xff] %v2191
        %2457 = vst [vmem:[%s223 + $0x128] sm:$0xff] %v2193
        %2458 = vst [vmem:[%s223 + $0x130] sm:$0xff] %v2196
        %2459 = vst [vmem:[%s223 + $0x138] sm:$0xff] %v2198
        %2460 = vst [vmem:[%s223 + $0x140] sm:$0xff] %v2201
        %2461 = vst [vmem:[%s223 + $0x148] sm:$0xff] %v2203
        %2462 = vst [vmem:[%s223 + $0x150] sm:$0xff] %v2206
        %2463 = vst [vmem:[%s223 + $0x158] sm:$0xff] %v2208
        %2464 = vst [vmem:[%s223 + $0x160] sm:$0xff] %v2211
        %2465 = vst [vmem:[%s223 + $0x168] sm:$0xff] %v2213
        %2466 = vst [vmem:[%s223 + $0x170] sm:$0xff] %v2216
        %2467 = vst [vmem:[%s223 + $0x178] sm:$0xff] %v2218
        %2468 = vst [vmem:[%s223 + $0x180] sm:$0xff] %v2221
        %2469 = vst [vmem:[%s223 + $0x188] sm:$0xff] %v2223
        %2470 = vst [vmem:[%s223 + $0x190] sm:$0xff] %v2226
        %2471 = vst [vmem:[%s223 + $0x198] sm:$0xff] %v2228
        %2472 = vst [vmem:[%s223 + $0x1a0] sm:$0xff] %v2231
        %2473 = vst [vmem:[%s223 + $0x1a8] sm:$0xff] %v2233
        %2474 = vst [vmem:[%s223 + $0x1b0] sm:$0xff] %v2236
        %2475 = vst [vmem:[%s223 + $0x1b8] sm:$0xff] %v2238
        %2476 = vst [vmem:[%s223 + $0x1c0] sm:$0xff] %v2241
        %2477 = vst [vmem:[%s223 + $0x1c8] sm:$0xff] %v2243
        %2478 = vst [vmem:[%s223 + $0x1d0] sm:$0xff] %v2246
        %2479 = vst [vmem:[%s223 + $0x1d8] sm:$0xff] %v2248
        %2480 = vst [vmem:[%s223 + $0x1e0] sm:$0xff] %v2251
        %2481 = vst [vmem:[%s223 + $0x1e8] sm:$0xff] %v2253
        %2482 = vst [vmem:[%s223 + $0x1f0] sm:$0xff] %v2256
        %2483 = vst [vmem:[%s223 + $0x1f8] sm:$0xff] %v2258
        %2484 = vst [vmem:[%s223 + $0x200] sm:$0xff] %v2261
        %2485 = vst [vmem:[%s223 + $0x208] sm:$0xff] %v2263
        %2486 = vst [vmem:[%s223 + $0x210] sm:$0xff] %v2266
        %2487 = vst [vmem:[%s223 + $0x218] sm:$0xff] %v2268
        %2488 = vst [vmem:[%s223 + $0x220] sm:$0xff] %v2271
        %2489 = vst [vmem:[%s223 + $0x228] sm:$0xff] %v2273
        %2490 = vst [vmem:[%s223 + $0x230] sm:$0xff] %v2276
        %2491 = vst [vmem:[%s223 + $0x238] sm:$0xff] %v2278
        %2492 = vst [vmem:[%s223 + $0x240] sm:$0xff] %v2281
        %2493 = vst [vmem:[%s223 + $0x248] sm:$0xff] %v2283
        %2494 = vst [vmem:[%s223 + $0x250] sm:$0xff] %v2286
        %2495 = vst [vmem:[%s223 + $0x258] sm:$0xff] %v2288
        %2496 = vst [vmem:[%s223 + $0x260] sm:$0xff] %v2291
        %2497 = vst [vmem:[%s223 + $0x268] sm:$0xff] %v2293
        %2498 = vst [vmem:[%s223 + $0x270] sm:$0xff] %v2296
        %2499 = vst [vmem:[%s223 + $0x278] sm:$0xff] %v2298
        %2500 = vst [vmem:[%s223 + $0x280] sm:$0xff] %v2301
        %2501 = vst [vmem:[%s223 + $0x288] sm:$0xff] %v2303
        %2502 = vst [vmem:[%s223 + $0x290] sm:$0xff] %v2306
        %2503 = vst [vmem:[%s223 + $0x298] sm:$0xff] %v2308
        %2504 = vst [vmem:[%s223 + $0x2a0] sm:$0xff] %v2311
        %2505 = vst [vmem:[%s223 + $0x2a8] sm:$0xff] %v2313
        %2506 = vst [vmem:[%s223 + $0x2b0] sm:$0xff] %v2316
        %2507 = vst [vmem:[%s223 + $0x2b8] sm:$0xff] %v2318
        %2508 = vst [vmem:[%s223 + $0x2c0] sm:$0xff] %v2321
        %2509 = vst [vmem:[%s223 + $0x2c8] sm:$0xff] %v2323
        %2510 = vst [vmem:[%s223 + $0x2d0] sm:$0xff] %v2326
        %2511 = vst [vmem:[%s223 + $0x2d8] sm:$0xff] %v2328
        %2512 = vst [vmem:[%s223 + $0x2e0] sm:$0xff] %v2331
        %2513 = vst [vmem:[%s223 + $0x2e8] sm:$0xff] %v2333
        %2514 = vst [vmem:[%s223 + $0x2f0] sm:$0xff] %v2336
        %2515 = vst [vmem:[%s223 + $0x2f8] sm:$0xff] %v2338
        %2516 = vst [vmem:[%s223 + $0x300] sm:$0xff] %v2341
        %2517 = vst [vmem:[%s223 + $0x308] sm:$0xff] %v2343
        %2518 = vst [vmem:[%s223 + $0x310] sm:$0xff] %v2346
        %2519 = vst [vmem:[%s223 + $0x318] sm:$0xff] %v2348
        %2520 = vst [vmem:[%s223 + $0x320] sm:$0xff] %v2351
        %2521 = vst [vmem:[%s223 + $0x328] sm:$0xff] %v2353
        %2522 = vst [vmem:[%s223 + $0x330] sm:$0xff] %v2356
        %2523 = vst [vmem:[%s223 + $0x338] sm:$0xff] %v2358
        %2524 = vst [vmem:[%s223 + $0x340] sm:$0xff] %v2361
        %2525 = vst [vmem:[%s223 + $0x348] sm:$0xff] %v2363
        %2526 = vst [vmem:[%s223 + $0x350] sm:$0xff] %v2366
        %2527 = vst [vmem:[%s223 + $0x358] sm:$0xff] %v2368
        %2528 = vst [vmem:[%s223 + $0x360] sm:$0xff] %v2371
        %2529 = vst [vmem:[%s223 + $0x368] sm:$0xff] %v2373
        %2530 = vst [vmem:[%s223 + $0x370] sm:$0xff] %v2376
        %2531 = vst [vmem:[%s223 + $0x378] sm:$0xff] %v2378
        %2532 = vst [vmem:[%s223 + $0x380] sm:$0xff] %v2381
        %2533 = vst [vmem:[%s223 + $0x388] sm:$0xff] %v2383
        %2534 = vst [vmem:[%s223 + $0x390] sm:$0xff] %v2386
        %2535 = vst [vmem:[%s223 + $0x398] sm:$0xff] %v2388
        %2536 = vst [vmem:[%s223 + $0x3a0] sm:$0xff] %v2391
        %2537 = vst [vmem:[%s223 + $0x3a8] sm:$0xff] %v2393
        %2538 = vst [vmem:[%s223 + $0x3b0] sm:$0xff] %v2396
        %2539 = vst [vmem:[%s223 + $0x3b8] sm:$0xff] %v2398
        %2540 = vst [vmem:[%s223 + $0x3c0] sm:$0xff] %v2401
        %2541 = vst [vmem:[%s223 + $0x3c8] sm:$0xff] %v2403
        %2542 = vst [vmem:[%s223 + $0x3d0] sm:$0xff] %v2406
        %2543 = vst [vmem:[%s223 + $0x3d8] sm:$0xff] %v2408
        %2544 = vst [vmem:[%s223 + $0x3e0] sm:$0xff] %v2411
        %2545 = vst [vmem:[%s223 + $0x3e8] sm:$0xff] %v2413
        %2546 = vst [vmem:[%s223 + $0x3f0] sm:$0xff] %v2416
        %2547 = vst [vmem:[%s223 + $0x3f8] sm:$0xff] %v2418
        %s2548 = sand.u32 %s97, 1
        %s2549 = scalar_lea.sflag [#allocation4], %s2548
        %s2550 = sand.u32 %s97, 1
        %s2551 = smul.addr %s2550, 1024
        %s2552 = scalar_lea.vmem [#allocation8], %s2551
        // Predicated region
        $region45: #{tpu_custom_call.1} parent=31 // pred_check
          %p2553 = pneg %p107
        $region46: #{tpu_custom_call.1} parent=31 // pred_check_branch
          %2555 = sbr.rel (%p2553) target = $region48
        $region47: #{tpu_custom_call.1} parent=31 // pred_region
          %s2556 = smul.u32 128, %s21
          %2558 = vsyncadd %s2549, 0
          %s2559 = smul.addr %s2556, 8
          %s2560 = scalar_lea.hbm %s3, %s2559
          %s2561 = sshll.u32 %s2552, 4
          %s2562 = int_to_ptr.vmem [resolvable:$true] %s2561
          %s2563 = sshll.u32 %s2560, 4
          %s2564 = int_to_ptr.hbm [resolvable:$true] %s2563
          %2569 = dma.vmem_to_hbm [thread:$0]  %s2562, 16384, %s2564, %s2549, 128, 128, 8
        $region48: #{tpu_custom_call.1} parent=31 // pred_fallthru
          _
      $region32: #{tpu_custom_call.1} parent=5 // pred_fallthru
        _
      %p2570 = scmp.le.s32.totalorder 2, %s16
      // Predicated region
      $region49: #{tpu_custom_call.1} parent=5 // pred_check
        %p2571 = pneg %p2570
      $region50: #{tpu_custom_call.1} parent=5 // pred_check_branch
        %2573 = sbr.rel (%p2571) target = $region52
      $region51: #{tpu_custom_call.1} parent=5 // pred_region
        %s2574 = ssub.s32 %s16, 2
        // Predicated region
        $region53: #{tpu_custom_call.1} parent=51 // pred_check
          %p2575 = pneg %p113
        $region54: #{tpu_custom_call.1} parent=51 // pred_check_branch
          %2577 = sbr.rel (%p2575) target = $region56
        $region55: #{tpu_custom_call.1} parent=51 // pred_region
          %s2578 = sand.u32 %s98, 1
          %s2579 = scalar_lea.sflag [#allocation4], %s2578
          %s2580 = sand.u32 %s98, 1
          %s2581 = smul.addr %s2580, 1024
          %s2582 = scalar_lea.vmem [#allocation8], %s2581
          %2584 = dma.done %s2579, 16384
        $region56: #{tpu_custom_call.1} parent=51 // pred_fallthru
          _
      $region52: #{tpu_custom_call.1} parent=5 // pred_fallthru
        _
    $region6: #{tpu_custom_call.1} parent=1 // loop_footer
      %s20 = sadd.s32 1, %s16
    $region7: #{tpu_custom_call.1} parent=1 // loop_footer_branch
      %15 = sbr.rel target = $region3
    $region8: #{tpu_custom_call.1} parent=1 // loop_exit
      _
    %2585 = vsyncpa [#allocation3], 1
    %s2586 = scalar_lea.sflag [#allocation3], 1
    %2587 = vsyncpa %s2586, 1
    %2588 = vsyncpa [#allocation6], 1
    %2589 = vsyncpa [#allocation4], 1
    %s2590 = scalar_lea.sflag [#allocation4], 1
    %2591 = vsyncpa %s2590, 1

</llo_original>
